<compile_context>
chip_gen: v5e
topology: v5e:2x2
jax: 0.10.0
libtpu: 0.0.40
codegen_flags: <defaults>
</compile_context>

<pallas_src>
import functools

import jax
import jax.numpy as jnp
from jax.experimental import pallas as pl
from jax.experimental.pallas import tpu as pltpu


def _round_up(x, m):
    return (x + m - 1) // m * m


def _adaattn_kernel(ck_ref, sk_ref, st_ref, ct_ref, mu_ref, istd_ref,
                    wf_ref, bf_ref, wg_ref, bg_ref, wh_ref, bh_ref,
                    out_ref,
                    f_sc, m_sc, l_sc, acc_sc,
                    *, c, ns, tile_ns):
    """Grid = (batch, Nc tiles, Ns tiles); Ns innermost ("arbitrary").

    ck_ref : (TILE_NC, Ck)  content_key tokens of this Nc tile
    sk_ref : (TILE_NS, Ck)  style_key tokens of this Ns tile
    st_ref : (TILE_NS, C)   style tokens of this Ns tile
    ct_ref : (TILE_NC, C)   content tokens of this Nc tile
    mu_ref, istd_ref : (1, C)  per-batch content mean / 1/std (JAX pre-pass)
    wf/wg : (Ck, Ck), wh : (C, C)  1x1-conv weights, pre-transposed (y = x @ W)
    bf/bg : (1, Ck), bh : (1, C)
    out   : (TILE_NC, C)
    scratch: f_sc (TILE_NC, Ck) bf16 | m_sc, l_sc (TILE_NC, 1) f32
             acc_sc (TILE_NC, 2C) f32  (fused [mean | E[x^2]] accumulator)
    """
    ks = pl.program_id(2)

    @pl.when(ks == 0)
    def _init():
        # Project the content-key tile once per (batch, Nc tile); keep bf16.
        f = jnp.dot(ck_ref[...], wf_ref[...],
                    preferred_element_type=jnp.float32) + bf_ref[...]
        f_sc[...] = f.astype(jnp.bfloat16)
        m_sc[...] = jnp.full_like(m_sc, -1e30)
        l_sc[...] = jnp.zeros_like(l_sc)
        acc_sc[...] = jnp.zeros_like(acc_sc)

    # Style projections for this Ns tile (1x1 convs on the MXU).
    g = (jnp.dot(sk_ref[...], wg_ref[...],
                 preferred_element_type=jnp.float32) + bg_ref[...]
         ).astype(jnp.bfloat16)                                   # (Tns, Ck)
    hs = jnp.dot(st_ref[...], wh_ref[...],
                 preferred_element_type=jnp.float32) + bh_ref[...]  # (Tns, C) f32
    hs2 = jnp.concatenate([hs, hs * hs], axis=-1).astype(jnp.bfloat16)  # (Tns, 2C)

    # Scores: contract the key dim of both operands (no explicit transpose).
    s = jax.lax.dot_general(
        f_sc[...], g,
        dimension_numbers=(((1,), (1,)), ((), ())),
        preferred_element_type=jnp.float32)                       # (Tnc, Tns)

    # Mask padded style tokens (only when Ns was padded up to a tile multiple).
    if ns % tile_ns != 0:
        col = ks * tile_ns + jax.lax.broadcasted_iota(jnp.int32, (1, tile_ns), 1)
        s = jnp.where(col < ns, s, -1e30)

    # Online softmax update.
    m_prev = m_sc[...]
    m_new = jnp.maximum(m_prev, jnp.max(s, axis=-1, keepdims=True))
    alpha = jnp.exp(m_prev - m_new)
    p = jnp.exp(s - m_new)
    l_sc[...] = alpha * l_sc[...] + jnp.sum(p, axis=-1, keepdims=True)
    acc_sc[...] = alpha * acc_sc[...] + jnp.dot(
        p.astype(jnp.bfloat16), hs2, preferred_element_type=jnp.float32)
    m_sc[...] = m_new

    @pl.when(ks == pl.num_programs(2) - 1)
    def _finalize():
        inv_l = pl.reciprocal(l_sc[...], approx=True)             # EUP
        acc = acc_sc[...] * inv_l
        mean = acc[:, :c]
        ex2 = acc[:, c:]
        std = jnp.sqrt(jnp.maximum(ex2 - mean * mean, 0.0))
        cn = (ct_ref[...] - mu_ref[...]) * istd_ref[...]          # mean_variance_norm
        out_ref[...] = (std * cn + mean).astype(out_ref.dtype)


def adaattn_forward(content, style, content_key, style_key, params,
                    *, tile_nc=None, tile_ns=None,
                    vmem_limit_bytes=48 * 1024 * 1024):
    """content/style/content_key/style_key are NCHW float32 arrays.

    params: dict with 'wf','bf','wg','bg','wh','bh'
            wf/wg: (Ck, Ck) pre-transposed so y = x @ W + b; wh: (C, C)
            bf/bg: (1, Ck); bh: (1, C)
    Returns NCHW output (b, C, h, w) matching the PyTorch module.
    """
    b, c, h, w = content.shape
    _, ck_dim, _, _ = content_key.shape
    _, _, hs_, ws_ = style.shape
    nc = h * w
    ns = hs_ * ws_

    # NCHW -> (b, tokens, channels)
    def flat(x):
        bb, cc, hh, ww = x.shape
        return jnp.transpose(x.reshape(bb, cc, hh * ww), (0, 2, 1))

    ct_f = flat(content)        # (b, Nc, C)
    st_f = flat(style)          # (b, Ns, C)
    ck_f = flat(content_key)    # (b, Nc, Ck)
    sk_f = flat(style_key)      # (b, Ns, Ck)

    # Plain-JAX pre-pass: per-batch, per-channel content statistics
    # (global over the spatial axis, so they can't be tiled along Nc).
    # TODO(synk): nc == 1 divides by zero (unbiased var), faithful to torch.
    mu = jnp.mean(ct_f, axis=1, keepdims=True)                         # (b,1,C)
    var = jnp.sum((ct_f - mu) ** 2, axis=1, keepdims=True) / (nc - 1) + 1e-5
    istd = jax.lax.rsqrt(var)                                          # (b,1,C)

    # Tile sizes: default 512 (good for v6e 128 MiB); pass smaller tiles for
    # v7x (64 MiB VMEM) / v5e (16 MiB default scoped limit, smaller MXU).
    if tile_nc is None:
        tile_nc = 512
    if tile_ns is None:
        tile_ns = 512
    tile_nc = _round_up(min(tile_nc, _round_up(nc, 8)), 8)
    tile_ns = _round_up(min(tile_ns, _round_up(ns, 8)), 8)

    nc_pad = _round_up(nc, tile_nc)
    ns_pad = _round_up(ns, tile_ns)

    def pad_tokens(x, n_pad):
        n = x.shape[1]
        if n_pad == n:
            return x
        return jnp.pad(x, ((0, 0), (0, n_pad - n), (0, 0)))

    ck_p = pad_tokens(ck_f, nc_pad)
    ct_p = pad_tokens(ct_f, nc_pad)
    sk_p = pad_tokens(sk_f, ns_pad)
    st_p = pad_tokens(st_f, ns_pad)

    wf, bf = params["wf"], params["bf"]
    wg, bg = params["wg"], params["bg"]
    wh, bh = params["wh"], params["bh"]

    grid = (b, nc_pad // tile_nc, ns_pad // tile_ns)

    in_specs = [
        pl.BlockSpec((pl.Squeezed(), tile_nc, ck_dim), lambda ib, ic, ks: (ib, ic, 0)),  # ck
        pl.BlockSpec((pl.Squeezed(), tile_ns, ck_dim), lambda ib, ic, ks: (ib, ks, 0)),  # sk
        pl.BlockSpec((pl.Squeezed(), tile_ns, c),      lambda ib, ic, ks: (ib, ks, 0)),  # st
        pl.BlockSpec((pl.Squeezed(), tile_nc, c),      lambda ib, ic, ks: (ib, ic, 0)),  # ct
        pl.BlockSpec((pl.Squeezed(), 1, c),            lambda ib, ic, ks: (ib, 0, 0)),   # mu
        pl.BlockSpec((pl.Squeezed(), 1, c),            lambda ib, ic, ks: (ib, 0, 0)),   # istd
        pl.BlockSpec((ck_dim, ck_dim),                 lambda ib, ic, ks: (0, 0)),       # wf
        pl.BlockSpec((1, ck_dim),                      lambda ib, ic, ks: (0, 0)),       # bf
        pl.BlockSpec((ck_dim, ck_dim),                 lambda ib, ic, ks: (0, 0)),       # wg
        pl.BlockSpec((1, ck_dim),                      lambda ib, ic, ks: (0, 0)),       # bg
        pl.BlockSpec((c, c),                           lambda ib, ic, ks: (0, 0)),       # wh
        pl.BlockSpec((1, c),                           lambda ib, ic, ks: (0, 0)),       # bh
    ]
    out_specs = pl.BlockSpec((pl.Squeezed(), tile_nc, c),
                             lambda ib, ic, ks: (ib, ic, 0))

    kernel = functools.partial(_adaattn_kernel, c=c, ns=ns, tile_ns=tile_ns)

    out_pad = pl.pallas_call(
        kernel,
        out_shape=jax.ShapeDtypeStruct((b, nc_pad, c), jnp.float32),
        grid_spec=pltpu.PrefetchScalarGridSpec(
            num_scalar_prefetch=0,
            grid=grid,
            in_specs=in_specs,
            out_specs=out_specs,
            scratch_shapes=[
                pltpu.VMEM((tile_nc, ck_dim), jnp.bfloat16),   # F tile (bf16)
                pltpu.VMEM((tile_nc, 1), jnp.float32),         # m (running max)
                pltpu.VMEM((tile_nc, 1), jnp.float32),         # l (running denom)
                pltpu.VMEM((tile_nc, 2 * c), jnp.float32),     # [mean | E[x^2]] acc
            ]),
        compiler_params=pltpu.CompilerParams(
            dimension_semantics=("parallel", "parallel", "arbitrary"),
            vmem_limit_bytes=vmem_limit_bytes),
    )(ck_p, sk_p, st_p, ct_p, mu, istd, wf, bf, wg, bg, wh, bh)

    out = out_pad[:, :nc, :]
    # (b, Nc, C) -> (b, h, w, C) -> NCHW
    return jnp.transpose(out.reshape(b, h, w, c), (0, 3, 1, 2))


def _jax_reference(content, style, content_key, style_key, params):
    """Pure-JAX f32 reference mirroring the PyTorch forward (no sampling branch)."""
    b, c, h, w = content.shape

    def flat(x):
        bb, cc, hh, ww = x.shape
        return jnp.transpose(x.reshape(bb, cc, hh * ww), (0, 2, 1))

    F = flat(content_key) @ params["wf"] + params["bf"]      # (b, Nc, Ck)
    G = flat(style_key) @ params["wg"] + params["bg"]        # (b, Ns, Ck)
    Hs = flat(style) @ params["wh"] + params["bh"]           # (b, Ns, C)

    S = jax.nn.softmax(jnp.einsum("bnk,bmk->bnm", F, G), axis=-1)
    mean = jnp.einsum("bnm,bmc->bnc", S, Hs)
    ex2 = jnp.einsum("bnm,bmc->bnc", S, Hs * Hs)
    std = jnp.sqrt(jnp.maximum(ex2 - mean ** 2, 0.0))

    ct = flat(content)
    mu = jnp.mean(ct, axis=1, keepdims=True)
    var = jnp.sum((ct - mu) ** 2, axis=1, keepdims=True) / (ct.shape[1] - 1) + 1e-5
    cn = (ct - mu) / jnp.sqrt(var)

    out = std * cn + mean
    return jnp.transpose(out.reshape(b, h, w, c), (0, 3, 1, 2))


if __name__ == "__main__":
    key = jax.random.PRNGKey(0)
    ks = jax.random.split(key, 10)

    # Small shapes: batch=2, in_planes=32, key_planes=32.
    # Content 8x8 (Nc=64), style 8x6 (Ns=48, not a tile multiple -> exercises
    # the padded / masked Ns path).  Ns <= max_sample -> no sampling branch.
    B, C, CK = 2, 32, 32
    H, W = 8, 8
    HS, WS = 8, 6

    content = jax.random.normal(ks[0], (B, C, H, W), jnp.float32)
    style = jax.random.normal(ks[1], (B, C, HS, WS), jnp.float32)
    content_key = jax.random.normal(ks[2], (B, CK, H, W), jnp.float32)
    style_key = jax.random.normal(ks[3], (B, CK, HS, WS), jnp.float32)

    # 1x1-conv parameters, stored pre-transposed: y = x @ W + b
    # (equivalent to nn.Conv2d 1x1 with weight W^T).
    params = {
        "wf": 0.1 * jax.random.normal(ks[4], (CK, CK), jnp.float32),
        "bf": 0.1 * jax.random.normal(ks[5], (1, CK), jnp.float32),
        "wg": 0.1 * jax.random.normal(ks[6], (CK, CK), jnp.float32),
        "bg": 0.1 * jax.random.normal(ks[7], (1, CK), jnp.float32),
        "wh": 0.1 * jax.random.normal(ks[8], (C, C), jnp.float32),
        "bh": 0.1 * jax.random.normal(ks[9], (1, C), jnp.float32),
    }

    # Small tiles so the demo actually exercises multi-tile Nc and the
    # multi-step online-softmax accumulation over Ns.
    out = adaattn_forward(content, style, content_key, style_key, params,
                          tile_nc=32, tile_ns=32)
    out = jax.block_until_ready(out)

    ref = _jax_reference(content, style, content_key, style_key, params)
    ref = jax.block_until_ready(ref)

    assert out.shape == (B, C, H, W)
    max_err = float(jnp.max(jnp.abs(out - ref)))
    mean_err = float(jnp.mean(jnp.abs(out - ref)))
    # Tolerance is loosened vs. a pure-f32 kernel because the MXU operands are
    # bf16 (f32 accumulation); the reference is full f32.
    assert mean_err < 2e-2, mean_err
    assert jnp.allclose(out, ref, rtol=1e-1, atol=1e-1), (max_err, mean_err)

    print("KERNEL_OK")
</pallas_src>

<mosaic_0001>
module attributes {stable_mosaic.version = 11 : i64} {
  func.func @_adaattn_kernel(%arg0: i32, %arg1: i32, %arg2: i32, %arg3: memref<1x32x32xf32, #tpu.memory_space<vmem>>, %arg4: memref<1x32x32xf32, #tpu.memory_space<vmem>>, %arg5: memref<1x32x32xf32, #tpu.memory_space<vmem>>, %arg6: memref<1x32x32xf32, #tpu.memory_space<vmem>>, %arg7: memref<1x1x32xf32, #tpu.memory_space<vmem>>, %arg8: memref<1x1x32xf32, #tpu.memory_space<vmem>>, %arg9: memref<32x32xf32, #tpu.memory_space<vmem>>, %arg10: memref<1x32xf32, #tpu.memory_space<vmem>>, %arg11: memref<32x32xf32, #tpu.memory_space<vmem>>, %arg12: memref<1x32xf32, #tpu.memory_space<vmem>>, %arg13: memref<32x32xf32, #tpu.memory_space<vmem>>, %arg14: memref<1x32xf32, #tpu.memory_space<vmem>>, %arg15: memref<1x32x32xf32, #tpu.memory_space<vmem>>, %arg16: memref<32x32xbf16, #tpu.memory_space<vmem>>, %arg17: memref<32x1xf32, #tpu.memory_space<vmem>>, %arg18: memref<32x1xf32, #tpu.memory_space<vmem>>, %arg19: memref<32x64xf32, #tpu.memory_space<vmem>>) attributes {dimension_semantics = [#tpu.dimension_semantics<parallel>, #tpu.dimension_semantics<parallel>, #tpu.dimension_semantics<arbitrary>], iteration_bounds = array<i64: 2, 2, 2>, scalar_prefetch = 0 : i64, scratch_operands = 4 : i64, tpu.core_type = #tpu.core_type<tc>, window_params = [{transform_indices = @transform_0, window_bounds = array<i64: 1, 32, 32>}, {transform_indices = @transform_1, window_bounds = array<i64: 1, 32, 32>}, {transform_indices = @transform_2, window_bounds = array<i64: 1, 32, 32>}, {transform_indices = @transform_3, window_bounds = array<i64: 1, 32, 32>}, {transform_indices = @transform_4, window_bounds = array<i64: 1, 1, 32>}, {transform_indices = @transform_5, window_bounds = array<i64: 1, 1, 32>}, {pipeline_mode = #tpu.pipeline_mode<synchronous>, transform_indices = @transform_6, window_bounds = array<i64: 32, 32>}, {pipeline_mode = #tpu.pipeline_mode<synchronous>, transform_indices = @transform_7, window_bounds = array<i64: 1, 32>}, {pipeline_mode = #tpu.pipeline_mode<synchronous>, transform_indices = @transform_8, window_bounds = array<i64: 32, 32>}, {pipeline_mode = #tpu.pipeline_mode<synchronous>, transform_indices = @transform_9, window_bounds = array<i64: 1, 32>}, {pipeline_mode = #tpu.pipeline_mode<synchronous>, transform_indices = @transform_10, window_bounds = array<i64: 32, 32>}, {pipeline_mode = #tpu.pipeline_mode<synchronous>, transform_indices = @transform_11, window_bounds = array<i64: 1, 32>}, {transform_indices = @transform_12, window_bounds = array<i64: 1, 32, 32>}]} {
    %c0_i32 = arith.constant 0 : i32
    %0 = arith.cmpi eq, %arg2, %c0_i32 : i32
    %1 = arith.extui %0 : i1 to i32
    %c0_i32_0 = arith.constant 0 : i32
    %2 = arith.cmpi ne, %1, %c0_i32_0 : i32
    scf.if %2 {
      %c0_35 = arith.constant 0 : index
      %c0_36 = arith.constant 0 : index
      %c0_37 = arith.constant 0 : index
      %59 = vector.load %arg3[%c0_35, %c0_36, %c0_37] : memref<1x32x32xf32, #tpu.memory_space<vmem>>, vector<1x32x32xf32>
      %60 = vector.shape_cast %59 : vector<1x32x32xf32> to vector<32x32xf32>
      %c0_38 = arith.constant 0 : index
      %c0_39 = arith.constant 0 : index
      %61 = vector.load %arg9[%c0_38, %c0_39] : memref<32x32xf32, #tpu.memory_space<vmem>>, vector<32x32xf32>
      %cst_40 = arith.constant dense<0.000000e+00> : vector<32x32xf32>
      %62 = tpu.matmul %60, %61, %cst_40 {dimension_numbers = #tpu.dot_dimension_numbers<[1], [0], [0], [1], [0, 0, 1, 1], [], []>} : vector<32x32xf32>, vector<32x32xf32>, vector<32x32xf32> -> vector<32x32xf32>
      %c0_41 = arith.constant 0 : index
      %c0_42 = arith.constant 0 : index
      %63 = vector.load %arg10[%c0_41, %c0_42] : memref<1x32xf32, #tpu.memory_space<vmem>>, vector<1x32xf32>
      %64 = vector.broadcast %63 : vector<1x32xf32> to vector<32x32xf32>
      %65 = arith.addf %62, %64 : vector<32x32xf32>
      %66 = arith.truncf %65 : vector<32x32xf32> to vector<32x32xbf16>
      %c0_43 = arith.constant 0 : index
      %c0_44 = arith.constant 0 : index
      %67 = vector.load %arg16[%c0_43, %c0_44] : memref<32x32xbf16, #tpu.memory_space<vmem>>, vector<32x32xbf16>
      tpu.vector_store %arg16[%c0_43, %c0_44], %66 {strides = array<i32>} : memref<32x32xbf16, #tpu.memory_space<vmem>>, vector<32x32xbf16>,
      %cst_45 = arith.constant -1.000000e+30 : f32
      %68 = vector.broadcast %cst_45 : f32 to vector<32x1xf32>
      %c0_46 = arith.constant 0 : index
      %c0_47 = arith.constant 0 : index
      %69 = vector.load %arg17[%c0_46, %c0_47] : memref<32x1xf32, #tpu.memory_space<vmem>>, vector<32x1xf32>
      tpu.vector_store %arg17[%c0_46, %c0_47], %68 {strides = array<i32>} : memref<32x1xf32, #tpu.memory_space<vmem>>, vector<32x1xf32>,
      %cst_48 = arith.constant 0.000000e+00 : f32
      %70 = vector.broadcast %cst_48 : f32 to vector<32x1xf32>
      %c0_49 = arith.constant 0 : index
      %c0_50 = arith.constant 0 : index
      %71 = vector.load %arg18[%c0_49, %c0_50] : memref<32x1xf32, #tpu.memory_space<vmem>>, vector<32x1xf32>
      tpu.vector_store %arg18[%c0_49, %c0_50], %70 {strides = array<i32>} : memref<32x1xf32, #tpu.memory_space<vmem>>, vector<32x1xf32>,
      %cst_51 = arith.constant 0.000000e+00 : f32
      %72 = vector.broadcast %cst_51 : f32 to vector<32x64xf32>
      %c0_52 = arith.constant 0 : index
      %c0_53 = arith.constant 0 : index
      %73 = vector.load %arg19[%c0_52, %c0_53] : memref<32x64xf32, #tpu.memory_space<vmem>>, vector<32x64xf32>
      tpu.vector_store %arg19[%c0_52, %c0_53], %72 {strides = array<i32>} : memref<32x64xf32, #tpu.memory_space<vmem>>, vector<32x64xf32>,
    } else {
    }
    %c0 = arith.constant 0 : index
    %c0_1 = arith.constant 0 : index
    %c0_2 = arith.constant 0 : index
    %3 = vector.load %arg4[%c0, %c0_1, %c0_2] : memref<1x32x32xf32, #tpu.memory_space<vmem>>, vector<1x32x32xf32>
    %4 = vector.shape_cast %3 : vector<1x32x32xf32> to vector<32x32xf32>
    %c0_3 = arith.constant 0 : index
    %c0_4 = arith.constant 0 : index
    %5 = vector.load %arg11[%c0_3, %c0_4] : memref<32x32xf32, #tpu.memory_space<vmem>>, vector<32x32xf32>
    %cst = arith.constant dense<0.000000e+00> : vector<32x32xf32>
    %6 = tpu.matmul %4, %5, %cst {dimension_numbers = #tpu.dot_dimension_numbers<[1], [0], [0], [1], [0, 0, 1, 1], [], []>} : vector<32x32xf32>, vector<32x32xf32>, vector<32x32xf32> -> vector<32x32xf32>
    %c0_5 = arith.constant 0 : index
    %c0_6 = arith.constant 0 : index
    %7 = vector.load %arg12[%c0_5, %c0_6] : memref<1x32xf32, #tpu.memory_space<vmem>>, vector<1x32xf32>
    %8 = vector.broadcast %7 : vector<1x32xf32> to vector<32x32xf32>
    %9 = arith.addf %6, %8 : vector<32x32xf32>
    %10 = arith.truncf %9 : vector<32x32xf32> to vector<32x32xbf16>
    %c0_7 = arith.constant 0 : index
    %c0_8 = arith.constant 0 : index
    %c0_9 = arith.constant 0 : index
    %11 = vector.load %arg5[%c0_7, %c0_8, %c0_9] : memref<1x32x32xf32, #tpu.memory_space<vmem>>, vector<1x32x32xf32>
    %12 = vector.shape_cast %11 : vector<1x32x32xf32> to vector<32x32xf32>
    %c0_10 = arith.constant 0 : index
    %c0_11 = arith.constant 0 : index
    %13 = vector.load %arg13[%c0_10, %c0_11] : memref<32x32xf32, #tpu.memory_space<vmem>>, vector<32x32xf32>
    %cst_12 = arith.constant dense<0.000000e+00> : vector<32x32xf32>
    %14 = tpu.matmul %12, %13, %cst_12 {dimension_numbers = #tpu.dot_dimension_numbers<[1], [0], [0], [1], [0, 0, 1, 1], [], []>} : vector<32x32xf32>, vector<32x32xf32>, vector<32x32xf32> -> vector<32x32xf32>
    %c0_13 = arith.constant 0 : index
    %c0_14 = arith.constant 0 : index
    %15 = vector.load %arg14[%c0_13, %c0_14] : memref<1x32xf32, #tpu.memory_space<vmem>>, vector<1x32xf32>
    %16 = vector.broadcast %15 : vector<1x32xf32> to vector<32x32xf32>
    %17 = arith.addf %14, %16 : vector<32x32xf32>
    %18 = arith.mulf %17, %17 : vector<32x32xf32>
    %19 = tpu.concatenate %17, %18 in 1 : vector<32x32xf32>, vector<32x32xf32> -> vector<32x64xf32>
    %20 = arith.truncf %19 : vector<32x64xf32> to vector<32x64xbf16>
    %c0_15 = arith.constant 0 : index
    %c0_16 = arith.constant 0 : index
    %21 = vector.load %arg16[%c0_15, %c0_16] : memref<32x32xbf16, #tpu.memory_space<vmem>>, vector<32x32xbf16>
    %cst_17 = arith.constant dense<0.000000e+00> : vector<32x32xf32>
    %22 = tpu.matmul %21, %10, %cst_17 {dimension_numbers = #tpu.dot_dimension_numbers<[1], [1], [0], [0], [0, 0, 1, 0], [], []>} : vector<32x32xbf16>, vector<32x32xbf16>, vector<32x32xf32> -> vector<32x32xf32>
    %c32_i32 = arith.constant 32 : i32
    %23 = arith.muli %arg2, %c32_i32 : i32
    %24 = tpu.iota {dimensions = array<i32: 1>} : vector<1x32xi32>
    %25 = vector.broadcast %23 : i32 to vector<1x32xi32>
    %26 = arith.addi %25, %24 : vector<1x32xi32>
    %c48_i32 = arith.constant 48 : i32
    %27 = vector.broadcast %c48_i32 : i32 to vector<1x32xi32>
    %28 = arith.cmpi slt, %26, %27 : vector<1x32xi32>
    %cst_18 = arith.constant -1.000000e+30 : f32
    %29 = vector.shape_cast %28 : vector<1x32xi1> to vector<1x32xi1>
    %30 = vector.broadcast %29 : vector<1x32xi1> to vector<32x32xi1>
    %31 = vector.broadcast %cst_18 : f32 to vector<32x32xf32>
    %32 = arith.select %30, %22, %31 : vector<32x32xi1>, vector<32x32xf32>
    %c0_19 = arith.constant 0 : index
    %c0_20 = arith.constant 0 : index
    %33 = vector.load %arg17[%c0_19, %c0_20] : memref<32x1xf32, #tpu.memory_space<vmem>>, vector<32x1xf32>
    %cst_21 = arith.constant dense<0xFF800000> : vector<32xf32>
    %34 = vector.multi_reduction <maximumf>, %32, %cst_21 [1] : vector<32x32xf32> to vector<32xf32>
    %35 = vector.shape_cast %34 : vector<32xf32> to vector<32x1xf32>
    %36 = arith.maximumf %33, %35 : vector<32x1xf32>
    %37 = arith.subf %33, %36 : vector<32x1xf32>
    %38 = math.exp %37 : vector<32x1xf32>
    %39 = vector.broadcast %36 : vector<32x1xf32> to vector<32x32xf32>
    %40 = arith.subf %32, %39 : vector<32x32xf32>
    %41 = math.exp %40 : vector<32x32xf32>
    %c0_22 = arith.constant 0 : index
    %c0_23 = arith.constant 0 : index
    %42 = vector.load %arg18[%c0_22, %c0_23] : memref<32x1xf32, #tpu.memory_space<vmem>>, vector<32x1xf32>
    %43 = arith.mulf %38, %42 : vector<32x1xf32>
    %cst_24 = arith.constant dense<0.000000e+00> : vector<32xf32>
    %44 = vector.multi_reduction <add>, %41, %cst_24 [1] : vector<32x32xf32> to vector<32xf32>
    %45 = vector.shape_cast %44 : vector<32xf32> to vector<32x1xf32>
    %46 = arith.addf %43, %45 : vector<32x1xf32>
    %c0_25 = arith.constant 0 : index
    %c0_26 = arith.constant 0 : index
    %47 = vector.load %arg18[%c0_25, %c0_26] : memref<32x1xf32, #tpu.memory_space<vmem>>, vector<32x1xf32>
    tpu.vector_store %arg18[%c0_25, %c0_26], %46 {strides = array<i32>} : memref<32x1xf32, #tpu.memory_space<vmem>>, vector<32x1xf32>,
    %c0_27 = arith.constant 0 : index
    %c0_28 = arith.constant 0 : index
    %48 = vector.load %arg19[%c0_27, %c0_28] : memref<32x64xf32, #tpu.memory_space<vmem>>, vector<32x64xf32>
    %49 = vector.broadcast %38 : vector<32x1xf32> to vector<32x64xf32>
    %50 = arith.mulf %49, %48 : vector<32x64xf32>
    %51 = arith.truncf %41 : vector<32x32xf32> to vector<32x32xbf16>
    %cst_29 = arith.constant dense<0.000000e+00> : vector<32x64xf32>
    %52 = tpu.matmul %51, %20, %cst_29 {dimension_numbers = #tpu.dot_dimension_numbers<[1], [0], [0], [1], [0, 0, 1, 1], [], []>} : vector<32x32xbf16>, vector<32x64xbf16>, vector<32x64xf32> -> vector<32x64xf32>
    %53 = arith.addf %50, %52 : vector<32x64xf32>
    %c0_30 = arith.constant 0 : index
    %c0_31 = arith.constant 0 : index
    %54 = vector.load %arg19[%c0_30, %c0_31] : memref<32x64xf32, #tpu.memory_space<vmem>>, vector<32x64xf32>
    tpu.vector_store %arg19[%c0_30, %c0_31], %53 {strides = array<i32>} : memref<32x64xf32, #tpu.memory_space<vmem>>, vector<32x64xf32>,
    %c0_32 = arith.constant 0 : index
    %c0_33 = arith.constant 0 : index
    %55 = vector.load %arg17[%c0_32, %c0_33] : memref<32x1xf32, #tpu.memory_space<vmem>>, vector<32x1xf32>
    tpu.vector_store %arg17[%c0_32, %c0_33], %36 {strides = array<i32>} : memref<32x1xf32, #tpu.memory_space<vmem>>, vector<32x1xf32>,
    %c1_i32 = arith.constant 1 : i32
    %56 = arith.cmpi eq, %arg2, %c1_i32 : i32
    %57 = arith.extui %56 : i1 to i32
    %c0_i32_34 = arith.constant 0 : i32
    %58 = arith.cmpi ne, %57, %c0_i32_34 : i32
    scf.if %58 {
      %c0_35 = arith.constant 0 : index
      %c0_36 = arith.constant 0 : index
      %59 = vector.load %arg18[%c0_35, %c0_36] : memref<32x1xf32, #tpu.memory_space<vmem>>, vector<32x1xf32>
      %60 = tpu.reciprocal %59 {approx = true} : vector<32x1xf32> -> vector<32x1xf32>
      %c0_37 = arith.constant 0 : index
      %c0_38 = arith.constant 0 : index
      %61 = vector.load %arg19[%c0_37, %c0_38] : memref<32x64xf32, #tpu.memory_space<vmem>>, vector<32x64xf32>
      %62 = vector.broadcast %60 : vector<32x1xf32> to vector<32x64xf32>
      %63 = arith.mulf %61, %62 : vector<32x64xf32>
      %64 = vector.extract_strided_slice %63 {offsets = [0, 0], sizes = [32, 32], strides = [1, 1]} : vector<32x64xf32> to vector<32x32xf32>
      %65 = vector.extract_strided_slice %63 {offsets = [0, 32], sizes = [32, 32], strides = [1, 1]} : vector<32x64xf32> to vector<32x32xf32>
      %66 = arith.mulf %64, %64 : vector<32x32xf32>
      %67 = arith.subf %65, %66 : vector<32x32xf32>
      %cst_39 = arith.constant 0.000000e+00 : f32
      %68 = vector.broadcast %cst_39 : f32 to vector<32x32xf32>
      %69 = arith.maximumf %67, %68 : vector<32x32xf32>
      %70 = math.sqrt %69 : vector<32x32xf32>
      %c0_40 = arith.constant 0 : index
      %c0_41 = arith.constant 0 : index
      %c0_42 = arith.constant 0 : index
      %71 = vector.load %arg6[%c0_40, %c0_41, %c0_42] : memref<1x32x32xf32, #tpu.memory_space<vmem>>, vector<1x32x32xf32>
      %72 = vector.shape_cast %71 : vector<1x32x32xf32> to vector<32x32xf32>
      %c0_43 = arith.constant 0 : index
      %c0_44 = arith.constant 0 : index
      %c0_45 = arith.constant 0 : index
      %73 = vector.load %arg7[%c0_43, %c0_44, %c0_45] : memref<1x1x32xf32, #tpu.memory_space<vmem>>, vector<1x1x32xf32>
      %74 = vector.shape_cast %73 : vector<1x1x32xf32> to vector<1x32xf32>
      %75 = vector.broadcast %74 : vector<1x32xf32> to vector<32x32xf32>
      %76 = arith.subf %72, %75 : vector<32x32xf32>
      %c0_46 = arith.constant 0 : index
      %c0_47 = arith.constant 0 : index
      %c0_48 = arith.constant 0 : index
      %77 = vector.load %arg8[%c0_46, %c0_47, %c0_48] : memref<1x1x32xf32, #tpu.memory_space<vmem>>, vector<1x1x32xf32>
      %78 = vector.shape_cast %77 : vector<1x1x32xf32> to vector<1x32xf32>
      %79 = vector.broadcast %78 : vector<1x32xf32> to vector<32x32xf32>
      %80 = arith.mulf %76, %79 : vector<32x32xf32>
      %81 = arith.mulf %70, %80 : vector<32x32xf32>
      %82 = arith.addf %81, %64 : vector<32x32xf32>
      %c0_49 = arith.constant 0 : index
      %c0_50 = arith.constant 0 : index
      %c0_51 = arith.constant 0 : index
      %83 = vector.load %arg15[%c0_49, %c0_50, %c0_51] : memref<1x32x32xf32, #tpu.memory_space<vmem>>, vector<1x32x32xf32>
      %84 = vector.shape_cast %83 : vector<1x32x32xf32> to vector<32x32xf32>
      %85 = vector.shape_cast %82 : vector<32x32xf32> to vector<1x32x32xf32>
      tpu.vector_store %arg15[%c0_49, %c0_50, %c0_51], %85 {strides = array<i32>} : memref<1x32x32xf32, #tpu.memory_space<vmem>>, vector<1x32x32xf32>,
    } else {
    }
    return
  }
  func.func @transform_0(%arg0: i32, %arg1: i32, %arg2: i32) -> (i32, i32, i32) {
    %c0_i32 = arith.constant 0 : i32
    %c0_i32_0 = arith.constant 0 : i32
    return %arg0, %arg1, %c0_i32 : i32, i32, i32
  }
  func.func @transform_1(%arg0: i32, %arg1: i32, %arg2: i32) -> (i32, i32, i32) {
    %c0_i32 = arith.constant 0 : i32
    %c0_i32_0 = arith.constant 0 : i32
    return %arg0, %arg2, %c0_i32 : i32, i32, i32
  }
  func.func @transform_2(%arg0: i32, %arg1: i32, %arg2: i32) -> (i32, i32, i32) {
    %c0_i32 = arith.constant 0 : i32
    %c0_i32_0 = arith.constant 0 : i32
    return %arg0, %arg2, %c0_i32 : i32, i32, i32
  }
  func.func @transform_3(%arg0: i32, %arg1: i32, %arg2: i32) -> (i32, i32, i32) {
    %c0_i32 = arith.constant 0 : i32
    %c0_i32_0 = arith.constant 0 : i32
    return %arg0, %arg1, %c0_i32 : i32, i32, i32
  }
  func.func @transform_4(%arg0: i32, %arg1: i32, %arg2: i32) -> (i32, i32, i32) {
    %c0_i32 = arith.constant 0 : i32
    %c0_i32_0 = arith.constant 0 : i32
    %c0_i32_1 = arith.constant 0 : i32
    return %arg0, %c0_i32, %c0_i32_0 : i32, i32, i32
  }
  func.func @transform_5(%arg0: i32, %arg1: i32, %arg2: i32) -> (i32, i32, i32) {
    %c0_i32 = arith.constant 0 : i32
    %c0_i32_0 = arith.constant 0 : i32
    %c0_i32_1 = arith.constant 0 : i32
    return %arg0, %c0_i32, %c0_i32_0 : i32, i32, i32
  }
  func.func @transform_6(%arg0: i32, %arg1: i32, %arg2: i32) -> (i32, i32) {
    %c0_i32 = arith.constant 0 : i32
    %c0_i32_0 = arith.constant 0 : i32
    %c0_i32_1 = arith.constant 0 : i32
    return %c0_i32, %c0_i32_0 : i32, i32
  }
  func.func @transform_7(%arg0: i32, %arg1: i32, %arg2: i32) -> (i32, i32) {
    %c0_i32 = arith.constant 0 : i32
    %c0_i32_0 = arith.constant 0 : i32
    %c0_i32_1 = arith.constant 0 : i32
    return %c0_i32, %c0_i32_0 : i32, i32
  }
  func.func @transform_8(%arg0: i32, %arg1: i32, %arg2: i32) -> (i32, i32) {
    %c0_i32 = arith.constant 0 : i32
    %c0_i32_0 = arith.constant 0 : i32
    %c0_i32_1 = arith.constant 0 : i32
    return %c0_i32, %c0_i32_0 : i32, i32
  }
  func.func @transform_9(%arg0: i32, %arg1: i32, %arg2: i32) -> (i32, i32) {
    %c0_i32 = arith.constant 0 : i32
    %c0_i32_0 = arith.constant 0 : i32
    %c0_i32_1 = arith.constant 0 : i32
    return %c0_i32, %c0_i32_0 : i32, i32
  }
  func.func @transform_10(%arg0: i32, %arg1: i32, %arg2: i32) -> (i32, i32) {
    %c0_i32 = arith.constant 0 : i32
    %c0_i32_0 = arith.constant 0 : i32
    %c0_i32_1 = arith.constant 0 : i32
    return %c0_i32, %c0_i32_0 : i32, i32
  }
  func.func @transform_11(%arg0: i32, %arg1: i32, %arg2: i32) -> (i32, i32) {
    %c0_i32 = arith.constant 0 : i32
    %c0_i32_0 = arith.constant 0 : i32
    %c0_i32_1 = arith.constant 0 : i32
    return %c0_i32, %c0_i32_0 : i32, i32
  }
  func.func @transform_12(%arg0: i32, %arg1: i32, %arg2: i32) -> (i32, i32, i32) {
    %c0_i32 = arith.constant 0 : i32
    %c0_i32_0 = arith.constant 0 : i32
    return %arg0, %arg1, %c0_i32 : i32, i32, i32
  }
}

</mosaic_0001>

<llo_original>
// kernel: tpu_custom_call.1
$region0: #{tpu_custom_call.1}
  #allocation0 [shape = 'u32[]', space=smem, size = 0x4, offset = 0x4, fixed_abs, tag = 'smem constant byte address 0x4 - core index']
  #allocation1 [shape = 'u32[72,128]{1,0:T(1,128)}', space=vmem, size = 0x9000, scoped, tag = 'internal scratch']
  #allocation2 [shape = 'bf16[32,32]{1,0:T(8,128)(2,1)}', space=vmem, size = 0x2000, scoped, tag = 'scratch operand']
  #allocation3 [shape = 'f32[32,1]{1,0:T(8,128)}', space=vmem, size = 0x4000, scoped, tag = 'scratch operand']
  #allocation4 [shape = 'f32[32,1]{1,0:T(8,128)}', space=vmem, size = 0x4000, scoped, tag = 'scratch operand']
  #allocation5 [shape = 'f32[32,64]{1,0:T(8,128)}', space=vmem, size = 0x4000, scoped, tag = 'scratch operand']
  %s0 = inlined_call_operand.vmem [shape: f32[2,64,32], index: 0, kind: input, shape index: {}]
  %s1 = inlined_call_operand.vmem [shape: f32[2,64,32], index: 1, kind: input, shape index: {}]
  %s2 = inlined_call_operand.vmem [shape: f32[2,64,32], index: 2, kind: input, shape index: {}]
  %s3 = inlined_call_operand.vmem [shape: f32[2,64,32], index: 3, kind: input, shape index: {}]
  %s4 = inlined_call_operand.vmem [shape: f32[2,1,32], index: 4, kind: input, shape index: {}]
  %s5 = inlined_call_operand.vmem [shape: f32[2,1,32], index: 5, kind: input, shape index: {}]
  %s6 = inlined_call_operand.vmem [shape: f32[32,32], index: 6, kind: input, shape index: {}]
  %s7 = inlined_call_operand.vmem [shape: f32[1,32], index: 7, kind: input, shape index: {}]
  %s8 = inlined_call_operand.vmem [shape: f32[32,32], index: 8, kind: input, shape index: {}]
  %s9 = inlined_call_operand.vmem [shape: f32[1,32], index: 9, kind: input, shape index: {}]
  %s10 = inlined_call_operand.vmem [shape: f32[32,32], index: 10, kind: input, shape index: {}]
  %s11 = inlined_call_operand.vmem [shape: f32[1,32], index: 11, kind: input, shape index: {}]
  %s12 = inlined_call_operand.vmem [shape: f32[2,64,32], index: 12, kind: output, shape index: {}]
  %s13 = sld [smem:[#allocation0]]
  $region89: #{tpu_custom_call.1} parent=0
    _
  %s15 = ssub.s32 1, %s13
  %s16 = scalar_select 0, %s15, %s13
  loop: start=0, step=1, limit=10
  $region2: #{tpu_custom_call.1} parent=0 // loop_pre_header
    _
  $region3: #{tpu_custom_call.1} parent=0 // loop_header
    %s18 = sphi 0, %s22
    %p19 = scmp.ge.s32.totalorder %s18, 10
    %s25 = sphi 0, %s44
    %s26 = sphi 0, %s40
    %s27 = sphi 0, %s36
    %s28 = sphi 0, %s25
    %s29 = sphi 0, %s26
    %s30 = sphi 0, %s27
    %s31 = sphi 0, %s28
    %s32 = sphi 0, %s29
    %s33 = sphi 0, %s30
    %s49 = sphi 0, %s51
    %s52 = sphi 0, %s49
    %s53 = sphi 0, %s52
    %s69 = sphi 0, %s53
    %s77 = sphi 0, %s79
    %s80 = sphi 0, %s77
    %s81 = sphi 0, %s80
    %s97 = sphi 0, %s81
    %s105 = sphi 0, %s107
    %s108 = sphi 0, %s105
    %s109 = sphi 0, %s108
    %s125 = sphi 0, %s109
    %s133 = sphi 0, %s135
    %s136 = sphi 0, %s133
    %s137 = sphi 0, %s136
    %s153 = sphi 0, %s137
    %s159 = sphi 0, %s161
    %s162 = sphi 0, %s159
    %s163 = sphi 0, %s162
    %s179 = sphi 0, %s163
    %s185 = sphi 0, %s187
    %s188 = sphi 0, %s185
    %s189 = sphi 0, %s188
    %s205 = sphi 0, %s189
    %s209 = sphi 0, %s209
    %s211 = sphi 0, %s209
    %s212 = sphi 0, %s211
    %s226 = sphi 0, %s212
    %s230 = sphi 0, %s230
    %s232 = sphi 0, %s230
    %s233 = sphi 0, %s232
    %s247 = sphi 0, %s233
    %s251 = sphi 0, %s251
    %s253 = sphi 0, %s251
    %s254 = sphi 0, %s253
    %s268 = sphi 0, %s254
    %s272 = sphi 0, %s272
    %s274 = sphi 0, %s272
    %s275 = sphi 0, %s274
    %s289 = sphi 0, %s275
    %s293 = sphi 0, %s293
    %s295 = sphi 0, %s293
    %s296 = sphi 0, %s295
    %s310 = sphi 0, %s296
    %s314 = sphi 0, %s314
    %s316 = sphi 0, %s314
    %s317 = sphi 0, %s316
    %s331 = sphi 0, %s317
    %s339 = sphi 0, %s341
    %s342 = sphi 0, %s339
    %s343 = sphi 0, %s342
    %s359 = sphi 0, %s343
  $region4: #{tpu_custom_call.1} parent=0 // loop_header_branch
    %21 = sbr.rel (%p19) target = $region8
  $region5: #{tpu_custom_call.1} parent=0 // loop_body
    %s23 = ssub.s32 %s18, 1
    %s24 = ssub.s32 %s18, 2
    %s34 = sadd.s32 1, %s27
    %p35 = scmp.ge.s32.totalorder %s34, 2
    %s36 = scalar_select %p35, 0, %s34
    %s37 = sadd.s32 1, %s26
    %s38 = scalar_select %p35, %s37, %s26
    %p39 = scmp.ge.s32.totalorder %s38, 2
    %s40 = scalar_select %p39, 0, %s38
    %s41 = sadd.s32 1, %s25
    %s42 = scalar_select %p39, %s41, %s25
    %p43 = scmp.ge.s32.totalorder %s42, 2
    %s44 = scalar_select %p43, 0, %s42
    %s45 = ssub.s32 %s25, %s44
    %s46 = ssub.s32 %s26, %s40
    %s47 = sor.u32 %s45, %s46
    %p48 = scmp.eq.s32.totalorder %s47, 0
    %s50 = sadd.s32 %s49, 1
    %s51 = scalar_select %p48, %s49, %s50
    %p54 = pneg %p48
    %p55 = scmp.eq.s32.totalorder %s18, 7
    %p56 = por %p54, %p55
    %p57 = scmp.ne.s32.totalorder %s49, %s52
    %p58 = scmp.eq.s32.totalorder %s18, 0
    %p59 = por %p57, %p58
    %p60 = scmp.ne.s32.totalorder %s49, %s52
    %p61 = scmp.eq.s32.totalorder %s23, 7
    %p62 = por %p60, %p61
    %p63 = scmp.ne.s32.totalorder %s52, %s53
    %p64 = scmp.eq.s32.totalorder %s23, 0
    %p65 = por %p63, %p64
    %p66 = scmp.ne.s32.totalorder %s52, %s53
    %p67 = scmp.eq.s32.totalorder %s24, 7
    %p68 = por %p66, %p67
    %p70 = scmp.ne.s32.totalorder %s53, %s69
    %p71 = scmp.eq.s32.totalorder %s24, 0
    %p72 = por %p70, %p71
    %s73 = ssub.s32 %s25, %s44
    %s74 = ssub.s32 %s27, %s36
    %s75 = sor.u32 %s73, %s74
    %p76 = scmp.eq.s32.totalorder %s75, 0
    %s78 = sadd.s32 %s77, 1
    %s79 = scalar_select %p76, %s77, %s78
    %p82 = pneg %p76
    %p83 = scmp.eq.s32.totalorder %s18, 7
    %p84 = por %p82, %p83
    %p85 = scmp.ne.s32.totalorder %s77, %s80
    %p86 = scmp.eq.s32.totalorder %s18, 0
    %p87 = por %p85, %p86
    %p88 = scmp.ne.s32.totalorder %s77, %s80
    %p89 = scmp.eq.s32.totalorder %s23, 7
    %p90 = por %p88, %p89
    %p91 = scmp.ne.s32.totalorder %s80, %s81
    %p92 = scmp.eq.s32.totalorder %s23, 0
    %p93 = por %p91, %p92
    %p94 = scmp.ne.s32.totalorder %s80, %s81
    %p95 = scmp.eq.s32.totalorder %s24, 7
    %p96 = por %p94, %p95
    %p98 = scmp.ne.s32.totalorder %s81, %s97
    %p99 = scmp.eq.s32.totalorder %s24, 0
    %p100 = por %p98, %p99
    %s101 = ssub.s32 %s25, %s44
    %s102 = ssub.s32 %s27, %s36
    %s103 = sor.u32 %s101, %s102
    %p104 = scmp.eq.s32.totalorder %s103, 0
    %s106 = sadd.s32 %s105, 1
    %s107 = scalar_select %p104, %s105, %s106
    %p110 = pneg %p104
    %p111 = scmp.eq.s32.totalorder %s18, 7
    %p112 = por %p110, %p111
    %p113 = scmp.ne.s32.totalorder %s105, %s108
    %p114 = scmp.eq.s32.totalorder %s18, 0
    %p115 = por %p113, %p114
    %p116 = scmp.ne.s32.totalorder %s105, %s108
    %p117 = scmp.eq.s32.totalorder %s23, 7
    %p118 = por %p116, %p117
    %p119 = scmp.ne.s32.totalorder %s108, %s109
    %p120 = scmp.eq.s32.totalorder %s23, 0
    %p121 = por %p119, %p120
    %p122 = scmp.ne.s32.totalorder %s108, %s109
    %p123 = scmp.eq.s32.totalorder %s24, 7
    %p124 = por %p122, %p123
    %p126 = scmp.ne.s32.totalorder %s109, %s125
    %p127 = scmp.eq.s32.totalorder %s24, 0
    %p128 = por %p126, %p127
    %s129 = ssub.s32 %s25, %s44
    %s130 = ssub.s32 %s26, %s40
    %s131 = sor.u32 %s129, %s130
    %p132 = scmp.eq.s32.totalorder %s131, 0
    %s134 = sadd.s32 %s133, 1
    %s135 = scalar_select %p132, %s133, %s134
    %p138 = pneg %p132
    %p139 = scmp.eq.s32.totalorder %s18, 7
    %p140 = por %p138, %p139
    %p141 = scmp.ne.s32.totalorder %s133, %s136
    %p142 = scmp.eq.s32.totalorder %s18, 0
    %p143 = por %p141, %p142
    %p144 = scmp.ne.s32.totalorder %s133, %s136
    %p145 = scmp.eq.s32.totalorder %s23, 7
    %p146 = por %p144, %p145
    %p147 = scmp.ne.s32.totalorder %s136, %s137
    %p148 = scmp.eq.s32.totalorder %s23, 0
    %p149 = por %p147, %p148
    %p150 = scmp.ne.s32.totalorder %s136, %s137
    %p151 = scmp.eq.s32.totalorder %s24, 7
    %p152 = por %p150, %p151
    %p154 = scmp.ne.s32.totalorder %s137, %s153
    %p155 = scmp.eq.s32.totalorder %s24, 0
    %p156 = por %p154, %p155
    %s157 = ssub.s32 %s25, %s44
    %p158 = scmp.eq.s32.totalorder %s157, 0
    %s160 = sadd.s32 %s159, 1
    %s161 = scalar_select %p158, %s159, %s160
    %p164 = pneg %p158
    %p165 = scmp.eq.s32.totalorder %s18, 7
    %p166 = por %p164, %p165
    %p167 = scmp.ne.s32.totalorder %s159, %s162
    %p168 = scmp.eq.s32.totalorder %s18, 0
    %p169 = por %p167, %p168
    %p170 = scmp.ne.s32.totalorder %s159, %s162
    %p171 = scmp.eq.s32.totalorder %s23, 7
    %p172 = por %p170, %p171
    %p173 = scmp.ne.s32.totalorder %s162, %s163
    %p174 = scmp.eq.s32.totalorder %s23, 0
    %p175 = por %p173, %p174
    %p176 = scmp.ne.s32.totalorder %s162, %s163
    %p177 = scmp.eq.s32.totalorder %s24, 7
    %p178 = por %p176, %p177
    %p180 = scmp.ne.s32.totalorder %s163, %s179
    %p181 = scmp.eq.s32.totalorder %s24, 0
    %p182 = por %p180, %p181
    %s183 = ssub.s32 %s25, %s44
    %p184 = scmp.eq.s32.totalorder %s183, 0
    %s186 = sadd.s32 %s185, 1
    %s187 = scalar_select %p184, %s185, %s186
    %p190 = pneg %p184
    %p191 = scmp.eq.s32.totalorder %s18, 7
    %p192 = por %p190, %p191
    %p193 = scmp.ne.s32.totalorder %s185, %s188
    %p194 = scmp.eq.s32.totalorder %s18, 0
    %p195 = por %p193, %p194
    %p196 = scmp.ne.s32.totalorder %s185, %s188
    %p197 = scmp.eq.s32.totalorder %s23, 7
    %p198 = por %p196, %p197
    %p199 = scmp.ne.s32.totalorder %s188, %s189
    %p200 = scmp.eq.s32.totalorder %s23, 0
    %p201 = por %p199, %p200
    %p202 = scmp.ne.s32.totalorder %s188, %s189
    %p203 = scmp.eq.s32.totalorder %s24, 7
    %p204 = por %p202, %p203
    %p206 = scmp.ne.s32.totalorder %s189, %s205
    %p207 = scmp.eq.s32.totalorder %s24, 0
    %p208 = por %p206, %p207
    %s210 = sadd.s32 %s209, 1
    %p213 = scmp.eq.s32.totalorder %s18, 7
    %p214 = scmp.ne.s32.totalorder %s209, %s211
    %p215 = scmp.eq.s32.totalorder %s18, 0
    %p216 = por %p214, %p215
    %p217 = scmp.ne.s32.totalorder %s209, %s211
    %p218 = scmp.eq.s32.totalorder %s23, 7
    %p219 = por %p217, %p218
    %p220 = scmp.ne.s32.totalorder %s211, %s212
    %p221 = scmp.eq.s32.totalorder %s23, 0
    %p222 = por %p220, %p221
    %p223 = scmp.ne.s32.totalorder %s211, %s212
    %p224 = scmp.eq.s32.totalorder %s24, 7
    %p225 = por %p223, %p224
    %p227 = scmp.ne.s32.totalorder %s212, %s226
    %p228 = scmp.eq.s32.totalorder %s24, 0
    %p229 = por %p227, %p228
    %s231 = sadd.s32 %s230, 1
    %p234 = scmp.eq.s32.totalorder %s18, 7
    %p235 = scmp.ne.s32.totalorder %s230, %s232
    %p236 = scmp.eq.s32.totalorder %s18, 0
    %p237 = por %p235, %p236
    %p238 = scmp.ne.s32.totalorder %s230, %s232
    %p239 = scmp.eq.s32.totalorder %s23, 7
    %p240 = por %p238, %p239
    %p241 = scmp.ne.s32.totalorder %s232, %s233
    %p242 = scmp.eq.s32.totalorder %s23, 0
    %p243 = por %p241, %p242
    %p244 = scmp.ne.s32.totalorder %s232, %s233
    %p245 = scmp.eq.s32.totalorder %s24, 7
    %p246 = por %p244, %p245
    %p248 = scmp.ne.s32.totalorder %s233, %s247
    %p249 = scmp.eq.s32.totalorder %s24, 0
    %p250 = por %p248, %p249
    %s252 = sadd.s32 %s251, 1
    %p255 = scmp.eq.s32.totalorder %s18, 7
    %p256 = scmp.ne.s32.totalorder %s251, %s253
    %p257 = scmp.eq.s32.totalorder %s18, 0
    %p258 = por %p256, %p257
    %p259 = scmp.ne.s32.totalorder %s251, %s253
    %p260 = scmp.eq.s32.totalorder %s23, 7
    %p261 = por %p259, %p260
    %p262 = scmp.ne.s32.totalorder %s253, %s254
    %p263 = scmp.eq.s32.totalorder %s23, 0
    %p264 = por %p262, %p263
    %p265 = scmp.ne.s32.totalorder %s253, %s254
    %p266 = scmp.eq.s32.totalorder %s24, 7
    %p267 = por %p265, %p266
    %p269 = scmp.ne.s32.totalorder %s254, %s268
    %p270 = scmp.eq.s32.totalorder %s24, 0
    %p271 = por %p269, %p270
    %s273 = sadd.s32 %s272, 1
    %p276 = scmp.eq.s32.totalorder %s18, 7
    %p277 = scmp.ne.s32.totalorder %s272, %s274
    %p278 = scmp.eq.s32.totalorder %s18, 0
    %p279 = por %p277, %p278
    %p280 = scmp.ne.s32.totalorder %s272, %s274
    %p281 = scmp.eq.s32.totalorder %s23, 7
    %p282 = por %p280, %p281
    %p283 = scmp.ne.s32.totalorder %s274, %s275
    %p284 = scmp.eq.s32.totalorder %s23, 0
    %p285 = por %p283, %p284
    %p286 = scmp.ne.s32.totalorder %s274, %s275
    %p287 = scmp.eq.s32.totalorder %s24, 7
    %p288 = por %p286, %p287
    %p290 = scmp.ne.s32.totalorder %s275, %s289
    %p291 = scmp.eq.s32.totalorder %s24, 0
    %p292 = por %p290, %p291
    %s294 = sadd.s32 %s293, 1
    %p297 = scmp.eq.s32.totalorder %s18, 7
    %p298 = scmp.ne.s32.totalorder %s293, %s295
    %p299 = scmp.eq.s32.totalorder %s18, 0
    %p300 = por %p298, %p299
    %p301 = scmp.ne.s32.totalorder %s293, %s295
    %p302 = scmp.eq.s32.totalorder %s23, 7
    %p303 = por %p301, %p302
    %p304 = scmp.ne.s32.totalorder %s295, %s296
    %p305 = scmp.eq.s32.totalorder %s23, 0
    %p306 = por %p304, %p305
    %p307 = scmp.ne.s32.totalorder %s295, %s296
    %p308 = scmp.eq.s32.totalorder %s24, 7
    %p309 = por %p307, %p308
    %p311 = scmp.ne.s32.totalorder %s296, %s310
    %p312 = scmp.eq.s32.totalorder %s24, 0
    %p313 = por %p311, %p312
    %s315 = sadd.s32 %s314, 1
    %p318 = scmp.eq.s32.totalorder %s18, 7
    %p319 = scmp.ne.s32.totalorder %s314, %s316
    %p320 = scmp.eq.s32.totalorder %s18, 0
    %p321 = por %p319, %p320
    %p322 = scmp.ne.s32.totalorder %s314, %s316
    %p323 = scmp.eq.s32.totalorder %s23, 7
    %p324 = por %p322, %p323
    %p325 = scmp.ne.s32.totalorder %s316, %s317
    %p326 = scmp.eq.s32.totalorder %s23, 0
    %p327 = por %p325, %p326
    %p328 = scmp.ne.s32.totalorder %s316, %s317
    %p329 = scmp.eq.s32.totalorder %s24, 7
    %p330 = por %p328, %p329
    %p332 = scmp.ne.s32.totalorder %s317, %s331
    %p333 = scmp.eq.s32.totalorder %s24, 0
    %p334 = por %p332, %p333
    %s335 = ssub.s32 %s25, %s44
    %s336 = ssub.s32 %s26, %s40
    %s337 = sor.u32 %s335, %s336
    %p338 = scmp.eq.s32.totalorder %s337, 0
    %s340 = sadd.s32 %s339, 1
    %s341 = scalar_select %p338, %s339, %s340
    %p344 = pneg %p338
    %p345 = scmp.eq.s32.totalorder %s18, 7
    %p346 = por %p344, %p345
    %p347 = scmp.ne.s32.totalorder %s339, %s342
    %p348 = scmp.eq.s32.totalorder %s18, 0
    %p349 = por %p347, %p348
    %p350 = scmp.ne.s32.totalorder %s339, %s342
    %p351 = scmp.eq.s32.totalorder %s23, 7
    %p352 = por %p350, %p351
    %p353 = scmp.ne.s32.totalorder %s342, %s343
    %p354 = scmp.eq.s32.totalorder %s23, 0
    %p355 = por %p353, %p354
    %p356 = scmp.ne.s32.totalorder %s342, %s343
    %p357 = scmp.eq.s32.totalorder %s24, 7
    %p358 = por %p356, %p357
    %p360 = scmp.ne.s32.totalorder %s343, %s359
    %p361 = scmp.eq.s32.totalorder %s24, 0
    %p362 = por %p360, %p361
    %p363 = scmp.le.s32.totalorder 1, %s18
    %p364 = scmp.lt.s32.totalorder %s18, 9
    %p365 = pnand %p363, %p364
    %p366 = pneg %p365
    // Predicated region
    $region9: #{tpu_custom_call.1} parent=5 // pred_check
      _
    $region10: #{tpu_custom_call.1} parent=5 // pred_check_branch
      %368 = sbr.rel (%p365) target = $region12
    $region11: #{tpu_custom_call.1} parent=5 // pred_region
      %s369 = ssub.s32 %s18, 1
      // Predicated region
      $region13: #{tpu_custom_call.1} parent=11 // pred_check
        %p370 = pneg %p222
      $region14: #{tpu_custom_call.1} parent=11 // pred_check_branch
        %372 = sbr.rel (%p370) target = $region16
      $region15: #{tpu_custom_call.1} parent=11 // pred_region
        _
      $region16: #{tpu_custom_call.1} parent=11 // pred_fallthru
        _
      // Predicated region
      $region17: #{tpu_custom_call.1} parent=11 // pred_check
        %p373 = pneg %p243
      $region18: #{tpu_custom_call.1} parent=11 // pred_check_branch
        %375 = sbr.rel (%p373) target = $region20
      $region19: #{tpu_custom_call.1} parent=11 // pred_region
        _
      $region20: #{tpu_custom_call.1} parent=11 // pred_fallthru
        _
      // Predicated region
      $region21: #{tpu_custom_call.1} parent=11 // pred_check
        %p376 = pneg %p264
      $region22: #{tpu_custom_call.1} parent=11 // pred_check_branch
        %378 = sbr.rel (%p376) target = $region24
      $region23: #{tpu_custom_call.1} parent=11 // pred_region
        _
      $region24: #{tpu_custom_call.1} parent=11 // pred_fallthru
        _
      // Predicated region
      $region25: #{tpu_custom_call.1} parent=11 // pred_check
        %p379 = pneg %p285
      $region26: #{tpu_custom_call.1} parent=11 // pred_check_branch
        %381 = sbr.rel (%p379) target = $region28
      $region27: #{tpu_custom_call.1} parent=11 // pred_region
        _
      $region28: #{tpu_custom_call.1} parent=11 // pred_fallthru
        _
      // Predicated region
      $region29: #{tpu_custom_call.1} parent=11 // pred_check
        %p382 = pneg %p306
      $region30: #{tpu_custom_call.1} parent=11 // pred_check_branch
        %384 = sbr.rel (%p382) target = $region32
      $region31: #{tpu_custom_call.1} parent=11 // pred_region
        _
      $region32: #{tpu_custom_call.1} parent=11 // pred_fallthru
        _
      // Predicated region
      $region33: #{tpu_custom_call.1} parent=11 // pred_check
        %p385 = pneg %p327
      $region34: #{tpu_custom_call.1} parent=11 // pred_check_branch
        %387 = sbr.rel (%p385) target = $region36
      $region35: #{tpu_custom_call.1} parent=11 // pred_region
        _
      $region36: #{tpu_custom_call.1} parent=11 // pred_fallthru
        _
    $region12: #{tpu_custom_call.1} parent=5 // pred_fallthru
      _
    %p388 = scmp.lt.s32.totalorder %s18, 8
    // Predicated region
    $region37: #{tpu_custom_call.1} parent=5 // pred_check
      %p389 = pneg %p388
    $region38: #{tpu_custom_call.1} parent=5 // pred_check_branch
      %391 = sbr.rel (%p389) target = $region40
    $region39: #{tpu_custom_call.1} parent=5 // pred_region
      // Predicated region
      $region41: #{tpu_custom_call.1} parent=39 // pred_check
        %p392 = pneg %p59
      $region42: #{tpu_custom_call.1} parent=39 // pred_check_branch
        %394 = sbr.rel (%p392) target = $region44
      $region43: #{tpu_custom_call.1} parent=39 // pred_region
        %s395 = smul.u32 4, %s26
        %p396 = scmp.lt.s32.totalorder %s25, 1
        %s397 = scalar_select %p396, %s25, 1
        %p398 = scmp.lt.s32.totalorder %s395, 7
        %s399 = scalar_select %p398, %s395, 7
        %s400 = smul.addr %s397, 8
        %s401 = sadd.s32 %s399, %s400
        %s402 = smul.addr %s401, 8
        %s403 = scalar_lea.vmem %s0, %s402
        %s404 = smul.u32 4, %s26
      $region44: #{tpu_custom_call.1} parent=39 // pred_fallthru
        _
      // Predicated region
      $region45: #{tpu_custom_call.1} parent=39 // pred_check
        %p405 = pneg %p87
      $region46: #{tpu_custom_call.1} parent=39 // pred_check_branch
        %407 = sbr.rel (%p405) target = $region48
      $region47: #{tpu_custom_call.1} parent=39 // pred_region
        %s408 = smul.u32 4, %s27
        %p409 = scmp.lt.s32.totalorder %s25, 1
        %s410 = scalar_select %p409, %s25, 1
        %p411 = scmp.lt.s32.totalorder %s408, 7
        %s412 = scalar_select %p411, %s408, 7
        %s413 = smul.addr %s410, 8
        %s414 = sadd.s32 %s412, %s413
        %s415 = smul.addr %s414, 8
        %s416 = scalar_lea.vmem %s1, %s415
        %s417 = smul.u32 4, %s27
      $region48: #{tpu_custom_call.1} parent=39 // pred_fallthru
        _
      // Predicated region
      $region49: #{tpu_custom_call.1} parent=39 // pred_check
        %p418 = pneg %p115
      $region50: #{tpu_custom_call.1} parent=39 // pred_check_branch
        %420 = sbr.rel (%p418) target = $region52
      $region51: #{tpu_custom_call.1} parent=39 // pred_region
        %s421 = smul.u32 4, %s27
        %p422 = scmp.lt.s32.totalorder %s25, 1
        %s423 = scalar_select %p422, %s25, 1
        %p424 = scmp.lt.s32.totalorder %s421, 7
        %s425 = scalar_select %p424, %s421, 7
        %s426 = smul.addr %s423, 8
        %s427 = sadd.s32 %s425, %s426
        %s428 = smul.addr %s427, 8
        %s429 = scalar_lea.vmem %s2, %s428
        %s430 = smul.u32 4, %s27
      $region52: #{tpu_custom_call.1} parent=39 // pred_fallthru
        _
      // Predicated region
      $region53: #{tpu_custom_call.1} parent=39 // pred_check
        %p431 = pneg %p143
      $region54: #{tpu_custom_call.1} parent=39 // pred_check_branch
        %433 = sbr.rel (%p431) target = $region56
      $region55: #{tpu_custom_call.1} parent=39 // pred_region
        %s434 = smul.u32 4, %s26
        %p435 = scmp.lt.s32.totalorder %s25, 1
        %s436 = scalar_select %p435, %s25, 1
        %p437 = scmp.lt.s32.totalorder %s434, 7
        %s438 = scalar_select %p437, %s434, 7
        %s439 = smul.addr %s436, 8
        %s440 = sadd.s32 %s438, %s439
        %s441 = smul.addr %s440, 8
        %s442 = scalar_lea.vmem %s3, %s441
        %s443 = smul.u32 4, %s26
      $region56: #{tpu_custom_call.1} parent=39 // pred_fallthru
        _
      // Predicated region
      $region57: #{tpu_custom_call.1} parent=39 // pred_check
        %p444 = pneg %p169
      $region58: #{tpu_custom_call.1} parent=39 // pred_check_branch
        %446 = sbr.rel (%p444) target = $region60
      $region59: #{tpu_custom_call.1} parent=39 // pred_region
        %p447 = scmp.lt.s32.totalorder %s25, 1
        %s448 = scalar_select %p447, %s25, 1
        %s449 = scalar_lea.vmem %s4, %s448
      $region60: #{tpu_custom_call.1} parent=39 // pred_fallthru
        _
      // Predicated region
      $region61: #{tpu_custom_call.1} parent=39 // pred_check
        %p450 = pneg %p195
      $region62: #{tpu_custom_call.1} parent=39 // pred_check_branch
        %452 = sbr.rel (%p450) target = $region64
      $region63: #{tpu_custom_call.1} parent=39 // pred_region
        %p453 = scmp.lt.s32.totalorder %s25, 1
        %s454 = scalar_select %p453, %s25, 1
        %s455 = scalar_lea.vmem %s5, %s454
      $region64: #{tpu_custom_call.1} parent=39 // pred_fallthru
        _
    $region40: #{tpu_custom_call.1} parent=5 // pred_fallthru
      _
    %p456 = scmp.le.s32.totalorder 1, %s18
    %p457 = scmp.lt.s32.totalorder %s18, 9
    %p458 = pnand %p456, %p457
    %p459 = pneg %p458
    // Predicated region
    $region65: #{tpu_custom_call.1} parent=5 // pred_check
      _
    $region66: #{tpu_custom_call.1} parent=5 // pred_check_branch
      %461 = sbr.rel (%p458) target = $region68
    $region67: #{tpu_custom_call.1} parent=5 // pred_region
      %s462 = ssub.s32 %s18, 1
      %s463 = smul.u32 4, %s29
      %p464 = scmp.lt.s32.totalorder %s28, 1
      %s465 = scalar_select %p464, %s28, 1
      %p466 = scmp.lt.s32.totalorder %s463, 7
      %s467 = scalar_select %p466, %s463, 7
      %s468 = smul.addr %s465, 8
      %s469 = sadd.s32 %s467, %s468
      %s470 = smul.addr %s469, 8
      %s471 = scalar_lea.vmem %s0, %s470
      %p472 = pneg %p65
      %p473 = pneg %p62
      %s474 = smul.u32 4, %s30
      %p475 = scmp.lt.s32.totalorder %s28, 1
      %s476 = scalar_select %p475, %s28, 1
      %p477 = scmp.lt.s32.totalorder %s474, 7
      %s478 = scalar_select %p477, %s474, 7
      %s479 = smul.addr %s476, 8
      %s480 = sadd.s32 %s478, %s479
      %s481 = smul.addr %s480, 8
      %s482 = scalar_lea.vmem %s1, %s481
      %p483 = pneg %p93
      %p484 = pneg %p90
      %s485 = smul.u32 4, %s30
      %p486 = scmp.lt.s32.totalorder %s28, 1
      %s487 = scalar_select %p486, %s28, 1
      %p488 = scmp.lt.s32.totalorder %s485, 7
      %s489 = scalar_select %p488, %s485, 7
      %s490 = smul.addr %s487, 8
      %s491 = sadd.s32 %s489, %s490
      %s492 = smul.addr %s491, 8
      %s493 = scalar_lea.vmem %s2, %s492
      %p494 = pneg %p121
      %p495 = pneg %p118
      %s496 = smul.u32 4, %s29
      %p497 = scmp.lt.s32.totalorder %s28, 1
      %s498 = scalar_select %p497, %s28, 1
      %p499 = scmp.lt.s32.totalorder %s496, 7
      %s500 = scalar_select %p499, %s496, 7
      %s501 = smul.addr %s498, 8
      %s502 = sadd.s32 %s500, %s501
      %s503 = smul.addr %s502, 8
      %s504 = scalar_lea.vmem %s3, %s503
      %p505 = pneg %p149
      %p506 = pneg %p146
      %p507 = scmp.lt.s32.totalorder %s28, 1
      %s508 = scalar_select %p507, %s28, 1
      %s509 = scalar_lea.vmem %s4, %s508
      %p510 = pneg %p175
      %p511 = pneg %p172
      %p512 = scmp.lt.s32.totalorder %s28, 1
      %s513 = scalar_select %p512, %s28, 1
      %s514 = scalar_lea.vmem %s5, %s513
      %p515 = pneg %p201
      %p516 = pneg %p198
      %p517 = pneg %p222
      %p518 = pneg %p219
      %p519 = pneg %p243
      %p520 = pneg %p240
      %p521 = pneg %p264
      %p522 = pneg %p261
      %p523 = pneg %p285
      %p524 = pneg %p282
      %p525 = pneg %p306
      %p526 = pneg %p303
      %p527 = pneg %p327
      %p528 = pneg %p324
      %p529 = pneg %p355
      %p530 = pneg %p352
      %s531 = smul.u32 4, %s29
      %p532 = scmp.lt.s32.totalorder %s28, 1
      %s533 = scalar_select %p532, %s28, 1
      %p534 = scmp.lt.s32.totalorder %s531, 7
      %s535 = scalar_select %p534, %s531, 7
      %s536 = smul.addr %s533, 8
      %s537 = sadd.s32 %s535, %s536
      %s538 = smul.addr %s537, 8
      %s539 = scalar_lea.vmem %s12, %s538
      %s540 = smul.u32 4, %s29
      %p541 = scmp.lt.s32.totalorder %s28, 1
      %s542 = scalar_select %p541, %s28, 1
      %p543 = scmp.lt.s32.totalorder %s540, 7
      %s544 = scalar_select %p543, %s540, 7
      %s545 = smul.addr %s542, 8
      %s546 = sadd.s32 %s544, %s545
      %s547 = smul.addr %s546, 8
      %s548 = scalar_lea.vmem %s0, %s547
      %s549 = smul.u32 4, %s29
      %s550 = smul.u32 4, %s30
      %p551 = scmp.lt.s32.totalorder %s28, 1
      %s552 = scalar_select %p551, %s28, 1
      %p553 = scmp.lt.s32.totalorder %s550, 7
      %s554 = scalar_select %p553, %s550, 7
      %s555 = smul.addr %s552, 8
      %s556 = sadd.s32 %s554, %s555
      %s557 = smul.addr %s556, 8
      %s558 = scalar_lea.vmem %s1, %s557
      %s559 = smul.u32 4, %s30
      %s560 = smul.u32 4, %s30
      %p561 = scmp.lt.s32.totalorder %s28, 1
      %s562 = scalar_select %p561, %s28, 1
      %p563 = scmp.lt.s32.totalorder %s560, 7
      %s564 = scalar_select %p563, %s560, 7
      %s565 = smul.addr %s562, 8
      %s566 = sadd.s32 %s564, %s565
      %s567 = smul.addr %s566, 8
      %s568 = scalar_lea.vmem %s2, %s567
      %s569 = smul.u32 4, %s30
      %s570 = smul.u32 4, %s29
      %p571 = scmp.lt.s32.totalorder %s28, 1
      %s572 = scalar_select %p571, %s28, 1
      %p573 = scmp.lt.s32.totalorder %s570, 7
      %s574 = scalar_select %p573, %s570, 7
      %s575 = smul.addr %s572, 8
      %s576 = sadd.s32 %s574, %s575
      %s577 = smul.addr %s576, 8
      %s578 = scalar_lea.vmem %s3, %s577
      %s579 = smul.u32 4, %s29
      %p580 = scmp.lt.s32.totalorder %s28, 1
      %s581 = scalar_select %p580, %s28, 1
      %s582 = scalar_lea.vmem %s4, %s581
      %p583 = scmp.lt.s32.totalorder %s28, 1
      %s584 = scalar_select %p583, %s28, 1
      %s585 = scalar_lea.vmem %s5, %s584
      %s586 = smul.u32 4, %s29
      %p587 = scmp.lt.s32.totalorder %s28, 1
      %s588 = scalar_select %p587, %s28, 1
      %p589 = scmp.lt.s32.totalorder %s586, 7
      %s590 = scalar_select %p589, %s586, 7
      %s591 = smul.addr %s588, 8
      %s592 = sadd.s32 %s590, %s591
      %s593 = smul.addr %s592, 8
      %s594 = scalar_lea.vmem %s12, %s593
      %s595 = smul.u32 4, %s29
      %p597 = scmp.eq.s32.totalorder %s30, 0
      // Predicated region
      $region69: #{tpu_custom_call.1} parent=67 // pred_check
        %p598 = pneg %p597
      $region70: #{tpu_custom_call.1} parent=67 // pred_check_branch
        %600 = sbr.rel (%p598) target = $region72
      $region71: #{tpu_custom_call.1} parent=67 // pred_region
        %v601 = vld [vmem:[%s548] sm:$0xff]
        %v602 = vld [vmem:[%s548 + $0x8] sm:$0xff]
        %v603 = vld [vmem:[%s548 + $0x10] sm:$0xff]
        %v604 = vld [vmem:[%s548 + $0x18] sm:$0xff]
        %v605 = vld [vmem:[%s6] sm:$0xff]
        %v606 = vld [vmem:[%s6 + $0x8] sm:$0xff]
        %v607 = vld [vmem:[%s6 + $0x10] sm:$0xff]
        %v608 = vld [vmem:[%s6 + $0x18] sm:$0xff]
        %v609 = vld [vmem:[%s7] sm:$0x1]
        %v611 = vperm.slane %v609, 0
        %vm613 = vcmask 261120
        %v615 = vsel %vm613, %v601, 0
        %v618 = vsel %vm613, %v602, 0
        %v621 = vsel %vm613, %v603, 0
        %v624 = vsel %vm613, %v604, 0
        %626 = vmatpush.msra.mxu0 0.0
        %627 = vmatpush.msra.mxu0 0.0
        %628 = vmatpush.msra.mxu0 0.0
        %629 = vmatpush.msra.mxu0 0.0
        %630 = vmatpush.msra.mxu0 0.0
        %631 = vmatpush.msra.mxu0 0.0
        %632 = vmatpush.msra.mxu0 0.0
        %633 = vmatpush.msra.mxu0 0.0
        %634 = vmatpush.msra.mxu0 0.0
        %635 = vmatpush.msra.mxu0 0.0
        %636 = vmatpush.msra.mxu0 0.0
        %637 = vmatpush.msra.mxu0 0.0
        %638 = vmatpush.msra.mxu0 %v608
        %639 = vmatpush.msra.mxu0 %v607
        %640 = vmatpush.msra.mxu0 %v606
        %641 = vmatpush.msra.mxu0 %v605
        %642 = vmatmul.f32.gmra.mxu0 %v615
        %v643 = vpop.f32.mrf.mxu0
        %v644 = vadd.f32 %v611, %v643
        %645 = vmatmul.f32.gmra.mxu0 %v618
        %v646 = vpop.f32.mrf.mxu0
        %v647 = vadd.f32 %v611, %v646
        %648 = vmatmul.f32.gmra.mxu0 %v621
        %v649 = vpop.f32.mrf.mxu0
        %v650 = vadd.f32 %v611, %v649
        %651 = vmatmul.f32.gmra.mxu0 %v624
        %v652 = vpop.f32.mrf.mxu0
        %v653 = vadd.f32 %v611, %v652
        %654 = vdwg.mxu0
        %v655 = vpack.c.bf16 %v644, %v644
        %v656 = vpack.c.bf16 %v647, %v647
        %v657 = vpack.c.bf16 %v650, %v650
        %v658 = vpack.c.bf16 %v653, %v653
        %vm659 = vcmask 257024
        %660 = vst.msk [vmem:[#allocation2] sm:$0xf] %vm659, %v655
        %661 = vst.msk [vmem:[#allocation2 + $0x4] sm:$0xf] %vm659, %v656
        %662 = vst.msk [vmem:[#allocation2 + $0x8] sm:$0xf] %vm659, %v657
        %663 = vst.msk [vmem:[#allocation2 + $0xc] sm:$0xf] %vm659, %v658
        %vm664 = vcmask 7168
        %665 = vst.msk [vmem:[#allocation3] sm:$0xff] %vm664, -1e+30
        %666 = vst.msk [vmem:[#allocation3 + $0x8] sm:$0xff] %vm664, -1e+30
        %667 = vst.msk [vmem:[#allocation3 + $0x10] sm:$0xff] %vm664, -1e+30
        %668 = vst.msk [vmem:[#allocation3 + $0x18] sm:$0xff] %vm664, -1e+30
        %669 = vst.msk [vmem:[#allocation4] sm:$0xff] %vm664, 0.0
        %670 = vst.msk [vmem:[#allocation4 + $0x8] sm:$0xff] %vm664, 0.0
        %671 = vst.msk [vmem:[#allocation4 + $0x10] sm:$0xff] %vm664, 0.0
        %672 = vst.msk [vmem:[#allocation4 + $0x18] sm:$0xff] %vm664, 0.0
        %vm673 = vcmask 523264
        %674 = vst.msk [vmem:[#allocation5] sm:$0xff] %vm673, 0.0
        %675 = vst.msk [vmem:[#allocation5 + $0x8] sm:$0xff] %vm673, 0.0
        %676 = vst.msk [vmem:[#allocation5 + $0x10] sm:$0xff] %vm673, 0.0
        %677 = vst.msk [vmem:[#allocation5 + $0x18] sm:$0xff] %vm673, 0.0
      $region72: #{tpu_custom_call.1} parent=67 // pred_fallthru
        _
      %v678 = vld [vmem:[%s558] sm:$0xff]
      %v679 = vld [vmem:[%s558 + $0x8] sm:$0xff]
      %v680 = vld [vmem:[%s558 + $0x10] sm:$0xff]
      %v681 = vld [vmem:[%s558 + $0x18] sm:$0xff]
      %v682 = vld [vmem:[%s8] sm:$0xff]
      %v683 = vld [vmem:[%s8 + $0x8] sm:$0xff]
      %v684 = vld [vmem:[%s8 + $0x10] sm:$0xff]
      %v685 = vld [vmem:[%s8 + $0x18] sm:$0xff]
      %v686 = vld [vmem:[%s9] sm:$0x1]
      %v688 = vperm.slane %v686, 0
      %vm690 = vcmask 261120
      %v692 = vsel %vm690, %v678, 0
      %v695 = vsel %vm690, %v679, 0
      %v698 = vsel %vm690, %v680, 0
      %v701 = vsel %vm690, %v681, 0
      %703 = vmatpush.msra.mxu0 0.0
      %704 = vmatpush.msra.mxu0 0.0
      %705 = vmatpush.msra.mxu0 0.0
      %706 = vmatpush.msra.mxu0 0.0
      %707 = vmatpush.msra.mxu0 0.0
      %708 = vmatpush.msra.mxu0 0.0
      %709 = vmatpush.msra.mxu0 0.0
      %710 = vmatpush.msra.mxu0 0.0
      %711 = vmatpush.msra.mxu0 0.0
      %712 = vmatpush.msra.mxu0 0.0
      %713 = vmatpush.msra.mxu0 0.0
      %714 = vmatpush.msra.mxu0 0.0
      %715 = vmatpush.msra.mxu0 %v685
      %716 = vmatpush.msra.mxu0 %v684
      %717 = vmatpush.msra.mxu0 %v683
      %718 = vmatpush.msra.mxu0 %v682
      %719 = vmatmul.f32.gmra.mxu0 %v692
      %v720 = vpop.f32.mrf.mxu0
      %v721 = vadd.f32 %v688, %v720
      %722 = vmatmul.f32.gmra.mxu0 %v695
      %v723 = vpop.f32.mrf.mxu0
      %v724 = vadd.f32 %v688, %v723
      %725 = vmatmul.f32.gmra.mxu0 %v698
      %v726 = vpop.f32.mrf.mxu0
      %v727 = vadd.f32 %v688, %v726
      %728 = vmatmul.f32.gmra.mxu0 %v701
      %v729 = vpop.f32.mrf.mxu0
      %v730 = vadd.f32 %v688, %v729
      %731 = vdwg.mxu0
      %v732 = vpack.c.bf16 %v724, %v721
      %v733 = vpack.c.bf16 %v730, %v727
      %v734 = vld [vmem:[%s568] sm:$0xff]
      %v735 = vld [vmem:[%s568 + $0x8] sm:$0xff]
      %v736 = vld [vmem:[%s568 + $0x10] sm:$0xff]
      %v737 = vld [vmem:[%s568 + $0x18] sm:$0xff]
      %v738 = vld [vmem:[%s10] sm:$0xff]
      %v739 = vld [vmem:[%s10 + $0x8] sm:$0xff]
      %v740 = vld [vmem:[%s10 + $0x10] sm:$0xff]
      %v741 = vld [vmem:[%s10 + $0x18] sm:$0xff]
      %v742 = vld [vmem:[%s11] sm:$0x1]
      %v744 = vperm.slane %v742, 0
      %v747 = vsel %vm690, %v734, 0
      %v750 = vsel %vm690, %v735, 0
      %v753 = vsel %vm690, %v736, 0
      %v756 = vsel %vm690, %v737, 0
      %758 = vmatpush.msra.mxu0 0.0
      %759 = vmatpush.msra.mxu0 0.0
      %760 = vmatpush.msra.mxu0 0.0
      %761 = vmatpush.msra.mxu0 0.0
      %762 = vmatpush.msra.mxu0 0.0
      %763 = vmatpush.msra.mxu0 0.0
      %764 = vmatpush.msra.mxu0 0.0
      %765 = vmatpush.msra.mxu0 0.0
      %766 = vmatpush.msra.mxu0 0.0
      %767 = vmatpush.msra.mxu0 0.0
      %768 = vmatpush.msra.mxu0 0.0
      %769 = vmatpush.msra.mxu0 0.0
      %770 = vmatpush.msra.mxu0 %v741
      %771 = vmatpush.msra.mxu0 %v740
      %772 = vmatpush.msra.mxu0 %v739
      %773 = vmatpush.msra.mxu0 %v738
      %774 = vmatmul.f32.gmra.mxu0 %v747
      %v775 = vpop.f32.mrf.mxu0
      %v776 = vadd.f32 %v744, %v775
      %777 = vmatmul.f32.gmra.mxu0 %v750
      %v778 = vpop.f32.mrf.mxu0
      %v779 = vadd.f32 %v744, %v778
      %780 = vmatmul.f32.gmra.mxu0 %v753
      %v781 = vpop.f32.mrf.mxu0
      %v782 = vadd.f32 %v744, %v781
      %783 = vmatmul.f32.gmra.mxu0 %v756
      %v784 = vpop.f32.mrf.mxu0
      %v785 = vadd.f32 %v744, %v784
      %786 = vdwg.mxu0
      %v787 = vmul.f32 %v776, %v776
      %v788 = vmul.f32 %v779, %v779
      %v789 = vmul.f32 %v782, %v782
      %v790 = vmul.f32 %v785, %v785
      %795 = vrot.lane.b32.xlu0 %v787, 32
      %v796 = vpop.permute.xlu0 %795
      %797 = vrot.lane.b32.xlu0 %v788, 32
      %v798 = vpop.permute.xlu0 %797
      %799 = vrot.lane.b32.xlu0 %v789, 32
      %v800 = vpop.permute.xlu0 %799
      %801 = vrot.lane.b32.xlu0 %v790, 32
      %v802 = vpop.permute.xlu0 %801
      %v807 = vsel %vm690, %v776, %v796
      %v808 = vsel %vm690, %v779, %v798
      %v809 = vsel %vm690, %v782, %v800
      %v810 = vsel %vm690, %v785, %v802
      %v811 = vpack.c.bf16 %v808, %v807
      %v812 = vpack.c.bf16 %v810, %v809
      %v813 = vld [vmem:[#allocation2] sm:$0xf]
      %v814 = vld [vmem:[#allocation2 + $0x4] sm:$0xf]
      %v815 = vld [vmem:[#allocation2 + $0x8] sm:$0xf]
      %v816 = vld [vmem:[#allocation2 + $0xc] sm:$0xf]
      %v821 = vunpack.c.l.b16 %v813
      %v822 = vunpack.c.l.b16 %v814
      %v823 = vunpack.c.l.b16 %v815
      %v824 = vunpack.c.l.b16 %v816
      %v825 = vpack.c.b16 %v822, %v821
      %v826 = vpack.c.b16 %v824, %v823
      %v828 = vsel %vm690, %v825, 0
      %v831 = vsel %vm690, %v826, 0
      %v834 = vsel %vm690, %v732, 0
      %v837 = vsel %vm690, %v733, 0
      %839 = vmatpush.bf16.xpose.msra.mxu0 0
      %840 = vmatpush.bf16.xpose.msra.mxu0 0
      %841 = vmatpush.bf16.xpose.msra.mxu0 0
      %842 = vmatpush.bf16.xpose.msra.mxu0 0
      %843 = vmatpush.bf16.xpose.msra.mxu0 0
      %844 = vmatpush.bf16.xpose.msra.mxu0 0
      %845 = vmatpush.bf16.xpose.msra.mxu0 %v837
      %846 = vmatpush.bf16.xpose.msra.mxu0 %v834
      %847 = vmatmul.bf16.gmra.mxu0 %v828
      %v848 = vpop.f32.mrf.mxu0
      %v849 = vadd.f32 0.0, %v848
      %v850 = vpop.f32.mrf.mxu0
      %v851 = vadd.f32 0.0, %v850
      %852 = vmatmul.bf16.gmra.mxu0 %v831
      %v853 = vpop.f32.mrf.mxu0
      %v854 = vadd.f32 0.0, %v853
      %v855 = vpop.f32.mrf.mxu0
      %v856 = vadd.f32 0.0, %v855
      %857 = vdwg.mxu0
      %s858 = smul.u32 %s30, 32
      %v859 = vlaneseq
      %v860 = vand.u32 %v859, 127
      %v861 = vstv %s858
      %v862 = vadd.s32 %v861, %v860
      %vm863 = vcmp.lt.s32.totalorder %v862, 48
      %v864 = vsel %vm863, 1, 0
      %vm865 = vcmp.eq.s32.totalorder %v864, 1
      %v866 = vsel %vm865, %v849, -1e+30
      %v867 = vsel %vm865, %v851, -1e+30
      %v868 = vsel %vm865, %v854, -1e+30
      %v869 = vsel %vm865, %v856, -1e+30
      %v870 = vld [vmem:[#allocation3] sm:$0xff]
      %v871 = vld [vmem:[#allocation3 + $0x8] sm:$0xff]
      %v872 = vld [vmem:[#allocation3 + $0x10] sm:$0xff]
      %v873 = vld [vmem:[#allocation3 + $0x18] sm:$0xff]
      %v874 = vsel %vm690, %v866, -inf
      %875 = vmax.xlane.f32.xlu0 %v874
      %v876 = vpop.xlane.xlu0 %875
      %v877 = vsel %vm690, %v867, -inf
      %878 = vmax.xlane.f32.xlu0 %v877
      %v879 = vpop.xlane.xlu0 %878
      %v880 = vsel %vm690, %v868, -inf
      %881 = vmax.xlane.f32.xlu0 %v880
      %v882 = vpop.xlane.xlu0 %881
      %v883 = vsel %vm690, %v869, -inf
      %884 = vmax.xlane.f32.xlu0 %v883
      %v885 = vpop.xlane.xlu0 %884
      %v886 = vmax.f32 %v870, %v876
      %v887 = vmax.f32 %v871, %v879
      %v888 = vmax.f32 %v872, %v882
      %v889 = vmax.f32 %v873, %v885
      %v890 = vsub.f32 %v870, %v886
      %v891 = vsub.f32 %v871, %v887
      %v892 = vsub.f32 %v872, %v888
      %v893 = vsub.f32 %v873, %v889
      %v894 = vmul.f32 %v890, 1.442695
      %v895 = vpow.pop %v894
      %v896 = vmul.f32 %v891, 1.442695
      %v897 = vpow.pop %v896
      %v898 = vmul.f32 %v892, 1.442695
      %v899 = vpow.pop %v898
      %v900 = vmul.f32 %v893, 1.442695
      %v901 = vpow.pop %v900
      %903 = vset.pattern.permute.xlu0 0
      %904 = vperm.xlu0 %903, %v886
      %v905 = vpop.permute.xlu0 %904
      %908 = vset.pattern.permute.xlu0 0
      %909 = vperm.xlu0 %908, %v887
      %v910 = vpop.permute.xlu0 %909
      %913 = vset.pattern.permute.xlu0 0
      %914 = vperm.xlu0 %913, %v888
      %v915 = vpop.permute.xlu0 %914
      %918 = vset.pattern.permute.xlu0 0
      %919 = vperm.xlu0 %918, %v889
      %v920 = vpop.permute.xlu0 %919
      %v922 = vsub.f32 %v866, %v905
      %v923 = vsub.f32 %v867, %v910
      %v924 = vsub.f32 %v868, %v915
      %v925 = vsub.f32 %v869, %v920
      %v926 = vmul.f32 %v922, 1.442695
      %v927 = vpow.pop %v926
      %v928 = vmul.f32 %v923, 1.442695
      %v929 = vpow.pop %v928
      %v930 = vmul.f32 %v924, 1.442695
      %v931 = vpow.pop %v930
      %v932 = vmul.f32 %v925, 1.442695
      %v933 = vpow.pop %v932
      %v934 = vld [vmem:[#allocation4] sm:$0xff]
      %v935 = vld [vmem:[#allocation4 + $0x8] sm:$0xff]
      %v936 = vld [vmem:[#allocation4 + $0x10] sm:$0xff]
      %v937 = vld [vmem:[#allocation4 + $0x18] sm:$0xff]
      %v938 = vmul.f32 %v895, %v934
      %v939 = vmul.f32 %v897, %v935
      %v940 = vmul.f32 %v899, %v936
      %v941 = vmul.f32 %v901, %v937
      %v942 = vsel %vm690, %v927, 0.0
      %943 = vadd.xlane.f32.xlu0 %v942
      %v944 = vpop.xlane.xlu0 %943
      %v945 = vsel %vm690, %v929, 0.0
      %946 = vadd.xlane.f32.xlu0 %v945
      %v947 = vpop.xlane.xlu0 %946
      %v948 = vsel %vm690, %v931, 0.0
      %949 = vadd.xlane.f32.xlu0 %v948
      %v950 = vpop.xlane.xlu0 %949
      %v951 = vsel %vm690, %v933, 0.0
      %952 = vadd.xlane.f32.xlu0 %v951
      %v953 = vpop.xlane.xlu0 %952
      %v954 = vadd.f32 %v938, %v944
      %v955 = vadd.f32 %v939, %v947
      %v956 = vadd.f32 %v940, %v950
      %v957 = vadd.f32 %v941, %v953
      %vm958 = vcmask 7168
      %959 = vst.msk [vmem:[#allocation4] sm:$0xff] %vm958, %v954
      %960 = vst.msk [vmem:[#allocation4 + $0x8] sm:$0xff] %vm958, %v955
      %961 = vst.msk [vmem:[#allocation4 + $0x10] sm:$0xff] %vm958, %v956
      %962 = vst.msk [vmem:[#allocation4 + $0x18] sm:$0xff] %vm958, %v957
      %v963 = vld [vmem:[#allocation5] sm:$0xff]
      %v964 = vld [vmem:[#allocation5 + $0x8] sm:$0xff]
      %v965 = vld [vmem:[#allocation5 + $0x10] sm:$0xff]
      %v966 = vld [vmem:[#allocation5 + $0x18] sm:$0xff]
      %968 = vset.pattern.permute.xlu0 0
      %969 = vperm.xlu0 %968, %v895
      %v970 = vpop.permute.xlu0 %969
      %973 = vset.pattern.permute.xlu0 0
      %974 = vperm.xlu0 %973, %v897
      %v975 = vpop.permute.xlu0 %974
      %978 = vset.pattern.permute.xlu0 0
      %979 = vperm.xlu0 %978, %v899
      %v980 = vpop.permute.xlu0 %979
      %983 = vset.pattern.permute.xlu0 0
      %984 = vperm.xlu0 %983, %v901
      %v985 = vpop.permute.xlu0 %984
      %v987 = vmul.f32 %v970, %v963
      %v988 = vmul.f32 %v975, %v964
      %v989 = vmul.f32 %v980, %v965
      %v990 = vmul.f32 %v985, %v966
      %v991 = vpack.c.bf16 %v929, %v927
      %v992 = vpack.c.bf16 %v933, %v931
      %v994 = vsel %vm690, %v991, 0
      %v997 = vsel %vm690, %v992, 0
      %999 = vmatpush.bf16.msra.mxu0 0
      %1000 = vmatpush.bf16.msra.mxu0 0
      %1001 = vmatpush.bf16.msra.mxu0 0
      %1002 = vmatpush.bf16.msra.mxu0 0
      %1003 = vmatpush.bf16.msra.mxu0 0
      %1004 = vmatpush.bf16.msra.mxu0 0
      %1005 = vmatpush.bf16.msra.mxu0 %v812
      %1006 = vmatpush.bf16.msra.mxu0 %v811
      %1007 = vmatmul.bf16.gmra.mxu0 %v994
      %v1008 = vpop.f32.mrf.mxu0
      %v1009 = vadd.f32 0.0, %v1008
      %v1010 = vpop.f32.mrf.mxu0
      %v1011 = vadd.f32 0.0, %v1010
      %1012 = vmatmul.bf16.gmra.mxu0 %v997
      %v1013 = vpop.f32.mrf.mxu0
      %v1014 = vadd.f32 0.0, %v1013
      %v1015 = vpop.f32.mrf.mxu0
      %v1016 = vadd.f32 0.0, %v1015
      %1017 = vdwg.mxu0
      %v1018 = vadd.f32 %v987, %v1009
      %v1019 = vadd.f32 %v988, %v1011
      %v1020 = vadd.f32 %v989, %v1014
      %v1021 = vadd.f32 %v990, %v1016
      %vm1022 = vcmask 523264
      %1023 = vst.msk [vmem:[#allocation5] sm:$0xff] %vm1022, %v1018
      %1024 = vst.msk [vmem:[#allocation5 + $0x8] sm:$0xff] %vm1022, %v1019
      %1025 = vst.msk [vmem:[#allocation5 + $0x10] sm:$0xff] %vm1022, %v1020
      %1026 = vst.msk [vmem:[#allocation5 + $0x18] sm:$0xff] %vm1022, %v1021
      %1027 = vst.msk [vmem:[#allocation3] sm:$0xff] %vm958, %v886
      %1028 = vst.msk [vmem:[#allocation3 + $0x8] sm:$0xff] %vm958, %v887
      %1029 = vst.msk [vmem:[#allocation3 + $0x10] sm:$0xff] %vm958, %v888
      %1030 = vst.msk [vmem:[#allocation3 + $0x18] sm:$0xff] %vm958, %v889
      %p1031 = scmp.eq.s32.totalorder %s30, 1
      // Predicated region
      $region73: #{tpu_custom_call.1} parent=67 // pred_check
        %p1032 = pneg %p1031
      $region74: #{tpu_custom_call.1} parent=67 // pred_check_branch
        %1034 = sbr.rel (%p1032) target = $region76
      $region75: #{tpu_custom_call.1} parent=67 // pred_region
        %v1035 = vld [vmem:[#allocation4] sm:$0xff]
        %v1036 = vld [vmem:[#allocation4 + $0x8] sm:$0xff]
        %v1037 = vld [vmem:[#allocation4 + $0x10] sm:$0xff]
        %v1038 = vld [vmem:[#allocation4 + $0x18] sm:$0xff]
        %v1039 = vrcp.pop %v1035
        %v1040 = vrcp.pop %v1036
        %v1041 = vrcp.pop %v1037
        %v1042 = vrcp.pop %v1038
        %v1043 = vld [vmem:[#allocation5] sm:$0xff]
        %v1044 = vld [vmem:[#allocation5 + $0x8] sm:$0xff]
        %v1045 = vld [vmem:[#allocation5 + $0x10] sm:$0xff]
        %v1046 = vld [vmem:[#allocation5 + $0x18] sm:$0xff]
        %1048 = vset.pattern.permute.xlu0 0
        %1049 = vperm.xlu0 %1048, %v1039
        %v1050 = vpop.permute.xlu0 %1049
        %1053 = vset.pattern.permute.xlu0 0
        %1054 = vperm.xlu0 %1053, %v1040
        %v1055 = vpop.permute.xlu0 %1054
        %1058 = vset.pattern.permute.xlu0 0
        %1059 = vperm.xlu0 %1058, %v1041
        %v1060 = vpop.permute.xlu0 %1059
        %1063 = vset.pattern.permute.xlu0 0
        %1064 = vperm.xlu0 %1063, %v1042
        %v1065 = vpop.permute.xlu0 %1064
        %v1067 = vmul.f32 %v1043, %v1050
        %v1068 = vmul.f32 %v1044, %v1055
        %v1069 = vmul.f32 %v1045, %v1060
        %v1070 = vmul.f32 %v1046, %v1065
        %v1071 = vmul.f32 %v1067, %v1067
        %v1072 = vmul.f32 %v1068, %v1068
        %v1073 = vmul.f32 %v1069, %v1069
        %v1074 = vmul.f32 %v1070, %v1070
        %1079 = vrot.lane.b32.xlu0 %v1071, 32
        %v1080 = vpop.permute.xlu0 %1079
        %1081 = vrot.lane.b32.xlu0 %v1072, 32
        %v1082 = vpop.permute.xlu0 %1081
        %1083 = vrot.lane.b32.xlu0 %v1073, 32
        %v1084 = vpop.permute.xlu0 %1083
        %1085 = vrot.lane.b32.xlu0 %v1074, 32
        %v1086 = vpop.permute.xlu0 %1085
        %v1091 = vsub.f32 %v1067, %v1080
        %v1092 = vsub.f32 %v1068, %v1082
        %v1093 = vsub.f32 %v1069, %v1084
        %v1094 = vsub.f32 %v1070, %v1086
        %v1095 = vmax.f32 %v1091, 0.0
        %v1096 = vmax.f32 %v1092, 0.0
        %v1097 = vmax.f32 %v1093, 0.0
        %v1098 = vmax.f32 %v1094, 0.0
        %v1099 = vrsqrt.pop %v1095
        %v1100 = vmul.f32 %v1099, %v1095
        %v1101 = vmul.f32 %v1100, %v1099
        %v1102 = vmul.f32 0.5, %v1101
        %v1103 = vsub.f32 1.5, %v1102
        %v1104 = vmul.f32 %v1099, %v1103
        %v1105 = vmul.f32 %v1095, %v1104
        %vm1106 = vcmp.eq.f32.partialorder %v1095, inf
        %v1107 = vsel %vm1106, %v1095, %v1105
        %vm1108 = vcmp.eq.f32.partialorder %v1095, 0.0
        %v1109 = vand.u32 %v1095, 2147483648
        %v1110 = vsel %vm1108, %v1109, %v1107
        %v1111 = vrsqrt.pop %v1096
        %v1112 = vmul.f32 %v1111, %v1096
        %v1113 = vmul.f32 %v1112, %v1111
        %v1114 = vmul.f32 0.5, %v1113
        %v1115 = vsub.f32 1.5, %v1114
        %v1116 = vmul.f32 %v1111, %v1115
        %v1117 = vmul.f32 %v1096, %v1116
        %vm1118 = vcmp.eq.f32.partialorder %v1096, inf
        %v1119 = vsel %vm1118, %v1096, %v1117
        %vm1120 = vcmp.eq.f32.partialorder %v1096, 0.0
        %v1121 = vand.u32 %v1096, 2147483648
        %v1122 = vsel %vm1120, %v1121, %v1119
        %v1123 = vrsqrt.pop %v1097
        %v1124 = vmul.f32 %v1123, %v1097
        %v1125 = vmul.f32 %v1124, %v1123
        %v1126 = vmul.f32 0.5, %v1125
        %v1127 = vsub.f32 1.5, %v1126
        %v1128 = vmul.f32 %v1123, %v1127
        %v1129 = vmul.f32 %v1097, %v1128
        %vm1130 = vcmp.eq.f32.partialorder %v1097, inf
        %v1131 = vsel %vm1130, %v1097, %v1129
        %vm1132 = vcmp.eq.f32.partialorder %v1097, 0.0
        %v1133 = vand.u32 %v1097, 2147483648
        %v1134 = vsel %vm1132, %v1133, %v1131
        %v1135 = vrsqrt.pop %v1098
        %v1136 = vmul.f32 %v1135, %v1098
        %v1137 = vmul.f32 %v1136, %v1135
        %v1138 = vmul.f32 0.5, %v1137
        %v1139 = vsub.f32 1.5, %v1138
        %v1140 = vmul.f32 %v1135, %v1139
        %v1141 = vmul.f32 %v1098, %v1140
        %vm1142 = vcmp.eq.f32.partialorder %v1098, inf
        %v1143 = vsel %vm1142, %v1098, %v1141
        %vm1144 = vcmp.eq.f32.partialorder %v1098, 0.0
        %v1145 = vand.u32 %v1098, 2147483648
        %v1146 = vsel %vm1144, %v1145, %v1143
        %v1147 = vld [vmem:[%s578] sm:$0xff]
        %v1148 = vld [vmem:[%s578 + $0x8] sm:$0xff]
        %v1149 = vld [vmem:[%s578 + $0x10] sm:$0xff]
        %v1150 = vld [vmem:[%s578 + $0x18] sm:$0xff]
        %v1151 = vld [vmem:[%s582] sm:$0x1]
        %v1153 = vperm.slane %v1151, 0
        %v1155 = vsub.f32 %v1147, %v1153
        %v1156 = vsub.f32 %v1148, %v1153
        %v1157 = vsub.f32 %v1149, %v1153
        %v1158 = vsub.f32 %v1150, %v1153
        %v1159 = vld [vmem:[%s585] sm:$0x1]
        %v1161 = vperm.slane %v1159, 0
        %v1163 = vmul.f32 %v1155, %v1161
        %v1164 = vmul.f32 %v1156, %v1161
        %v1165 = vmul.f32 %v1157, %v1161
        %v1166 = vmul.f32 %v1158, %v1161
        %1171 = vrot.lane.b32.xlu0 %v1163, 32
        %v1172 = vpop.permute.xlu0 %1171
        %1173 = vrot.lane.b32.xlu0 %v1164, 32
        %v1174 = vpop.permute.xlu0 %1173
        %1175 = vrot.lane.b32.xlu0 %v1165, 32
        %v1176 = vpop.permute.xlu0 %1175
        %1177 = vrot.lane.b32.xlu0 %v1166, 32
        %v1178 = vpop.permute.xlu0 %1177
        %v1183 = vmul.f32 %v1110, %v1172
        %v1184 = vmul.f32 %v1122, %v1174
        %v1185 = vmul.f32 %v1134, %v1176
        %v1186 = vmul.f32 %v1146, %v1178
        %1191 = vrot.lane.b32.xlu0 %v1067, 32
        %v1192 = vpop.permute.xlu0 %1191
        %1193 = vrot.lane.b32.xlu0 %v1068, 32
        %v1194 = vpop.permute.xlu0 %1193
        %1195 = vrot.lane.b32.xlu0 %v1069, 32
        %v1196 = vpop.permute.xlu0 %1195
        %1197 = vrot.lane.b32.xlu0 %v1070, 32
        %v1198 = vpop.permute.xlu0 %1197
        %v1203 = vadd.f32 %v1183, %v1192
        %v1204 = vadd.f32 %v1184, %v1194
        %v1205 = vadd.f32 %v1185, %v1196
        %v1206 = vadd.f32 %v1186, %v1198
        %1211 = vrot.lane.b32.xlu0 %v1203, 96
        %v1212 = vpop.permute.xlu0 %1211
        %1213 = vrot.lane.b32.xlu0 %v1204, 96
        %v1214 = vpop.permute.xlu0 %1213
        %1215 = vrot.lane.b32.xlu0 %v1205, 96
        %v1216 = vpop.permute.xlu0 %1215
        %1217 = vrot.lane.b32.xlu0 %v1206, 96
        %v1218 = vpop.permute.xlu0 %1217
        %1223 = vst.msk [vmem:[%s594] sm:$0xff] %vm690, %v1212
        %1224 = vst.msk [vmem:[%s594 + $0x8] sm:$0xff] %vm690, %v1214
        %1225 = vst.msk [vmem:[%s594 + $0x10] sm:$0xff] %vm690, %v1216
        %1226 = vst.msk [vmem:[%s594 + $0x18] sm:$0xff] %vm690, %v1218
      $region76: #{tpu_custom_call.1} parent=67 // pred_fallthru
        _
      %s1227 = smul.u32 4, %s29
      %p1228 = scmp.lt.s32.totalorder %s28, 1
      %s1229 = scalar_select %p1228, %s28, 1
      %p1230 = scmp.lt.s32.totalorder %s1227, 7
      %s1231 = scalar_select %p1230, %s1227, 7
      %s1232 = smul.addr %s1229, 8
      %s1233 = sadd.s32 %s1231, %s1232
      %s1234 = smul.addr %s1233, 8
      %s1235 = scalar_lea.vmem %s12, %s1234
      // Predicated region
      $region77: #{tpu_custom_call.1} parent=67 // pred_check
        %p1236 = pneg %p352
      $region78: #{tpu_custom_call.1} parent=67 // pred_check_branch
        %1238 = sbr.rel (%p1236) target = $region80
      $region79: #{tpu_custom_call.1} parent=67 // pred_region
        %s1239 = smul.u32 4, %s29
      $region80: #{tpu_custom_call.1} parent=67 // pred_fallthru
        _
    $region68: #{tpu_custom_call.1} parent=5 // pred_fallthru
      _
    %p1240 = scmp.le.s32.totalorder 2, %s18
    // Predicated region
    $region81: #{tpu_custom_call.1} parent=5 // pred_check
      %p1241 = pneg %p1240
    $region82: #{tpu_custom_call.1} parent=5 // pred_check_branch
      %1243 = sbr.rel (%p1241) target = $region84
    $region83: #{tpu_custom_call.1} parent=5 // pred_region
      %s1244 = ssub.s32 %s18, 2
      // Predicated region
      $region85: #{tpu_custom_call.1} parent=83 // pred_check
        %p1245 = pneg %p358
      $region86: #{tpu_custom_call.1} parent=83 // pred_check_branch
        %1247 = sbr.rel (%p1245) target = $region88
      $region87: #{tpu_custom_call.1} parent=83 // pred_region
        %s1248 = smul.u32 4, %s32
        %p1249 = scmp.lt.s32.totalorder %s31, 1
        %s1250 = scalar_select %p1249, %s31, 1
        %p1251 = scmp.lt.s32.totalorder %s1248, 7
        %s1252 = scalar_select %p1251, %s1248, 7
        %s1253 = smul.addr %s1250, 8
        %s1254 = sadd.s32 %s1252, %s1253
        %s1255 = smul.addr %s1254, 8
        %s1256 = scalar_lea.vmem %s12, %s1255
      $region88: #{tpu_custom_call.1} parent=83 // pred_fallthru
        _
    $region84: #{tpu_custom_call.1} parent=5 // pred_fallthru
      _
  $region6: #{tpu_custom_call.1} parent=0 // loop_footer
    %s22 = sadd.s32 1, %s18
  $region7: #{tpu_custom_call.1} parent=0 // loop_footer_branch
    %17 = sbr.rel target = $region3
  $region8: #{tpu_custom_call.1} parent=0 // loop_exit
    _

</llo_original>
